<compile_context>
chip_gen: v6e
topology: v6e:2x2x1
jax: 0.10.0
libtpu: 0.0.40
codegen_flags: <defaults>
</compile_context>

<pallas_src>
import jax
import jax.numpy as jnp
from jax.experimental import pallas as pl
from jax.experimental.pallas import tpu as pltpu

IN_DIM = 28 * 28          # 784
H1 = 256
H2 = 128


def _round_up(v, m):
    return (v + m - 1) // m * m


def _fc_autoencoder_kernel(
    x_ref,        # (TB, 784)  f32
    w1_ref,       # (784, 256) bf16
    b1_ref,       # (1, 256)   f32
    w2_ref,       # (256, 128) bf16
    b2_ref,       # (1, 128)   f32
    w3_ref,       # (128, 256) bf16
    b3_ref,       # (1, 256)   f32
    w4_ref,       # (256, 784) bf16
    b4_ref,       # (1, 784)   f32
    o_ref,        # (TB, 784)  bf16
):
    # Cast the input tile to bf16 once (MXU operand); accumulation stays f32.
    x = x_ref[...].astype(jnp.bfloat16)

    # encoder: Linear(784, 256) + ReLU  (bf16 epilogue; downcast needed for MXU anyway)
    h = jnp.dot(x, w1_ref[...], preferred_element_type=jnp.float32) + b1_ref[...]
    h = jnp.maximum(h.astype(jnp.bfloat16), 0.0)

    # encoder: Linear(256, 128) + ReLU
    z = jnp.dot(h, w2_ref[...], preferred_element_type=jnp.float32) + b2_ref[...]
    z = jnp.maximum(z.astype(jnp.bfloat16), 0.0)

    # decoder: Linear(128, 256) + ReLU
    d = jnp.dot(z, w3_ref[...], preferred_element_type=jnp.float32) + b3_ref[...]
    d = jnp.maximum(d.astype(jnp.bfloat16), 0.0)

    # decoder: Linear(256, 784) + Sigmoid.
    # sigmoid(y) = 0.5 * tanh(0.5 * y) + 0.5  -- one EUP transcendental, no overflow.
    y = jnp.dot(d, w4_ref[...], preferred_element_type=jnp.float32) + b4_ref[...]
    o_ref[...] = (0.5 * jnp.tanh(0.5 * y) + 0.5).astype(o_ref.dtype)


def prepare_params(params):
    """One-time weight prep (hoisted out of the forward path): bf16 MXU weights."""
    w1, b1, w2, b2, w3, b3, w4, b4 = params
    bf = lambda w: w.astype(jnp.bfloat16)
    return (bf(w1), b1, bf(w2), b2, bf(w3), b3, bf(w4), b4)


@jax.jit
def fc_autoencoder_forward(x, prepared_params):
    """x: (B, 1, 28, 28) float32 -> (B, 1, 28, 28) float32."""
    b = x.shape[0]
    x_flat = x.reshape(b, IN_DIM)            # same semantics as torch x.view(-1, 784)

    (w1, b1, w2, b2, w3, b3, w4, b4) = prepared_params

    # Batch tile: multiple of 8 sublanes (or == full batch for tiny B).  Aim for
    # >= 2 grid steps (v7x has 2 TensorCores) while keeping tiles big (<=1024
    # rows keeps total VMEM ~18 MiB, safely under v7x's 64 MiB).  Remainder
    # rows are handled by the cdiv grid (masked edge block), not by padding.
    if b <= 8:
        tb = b
    else:
        tb = min(1024, _round_up(pl.cdiv(b, 2), 8))
    grid = (pl.cdiv(b, tb),)

    const = lambda i: (0, 0)                 # weights/biases: VMEM-resident across tiles
    tile = lambda i: (i, 0)                  # x / out: batch-tiled, double-buffered

    mac = IN_DIM * H1 + H1 * H2 + H2 * H1 + H1 * IN_DIM
    flops = 2 * b * mac
    bytes_accessed = (
        b * IN_DIM * 4                                   # x (f32)
        + b * IN_DIM * 2                                 # out (bf16)
        + mac * 2                                        # weights (bf16)
        + (H1 + H2 + H1 + IN_DIM) * 4                    # biases (f32)
    )

    out_flat = pl.pallas_call(
        _fc_autoencoder_kernel,
        out_shape=jax.ShapeDtypeStruct((b, IN_DIM), jnp.bfloat16),
        grid=grid,
        in_specs=[
            pl.BlockSpec((tb, IN_DIM), tile),
            pl.BlockSpec((IN_DIM, H1), const),
            pl.BlockSpec((1, H1), const),
            pl.BlockSpec((H1, H2), const),
            pl.BlockSpec((1, H2), const),
            pl.BlockSpec((H2, H1), const),
            pl.BlockSpec((1, H1), const),
            pl.BlockSpec((H1, IN_DIM), const),
            pl.BlockSpec((1, IN_DIM), const),
        ],
        out_specs=pl.BlockSpec((tb, IN_DIM), tile),
        compiler_params=pltpu.CompilerParams(
            dimension_semantics=("parallel",),
            vmem_limit_bytes=48 << 20,
        ),
        cost_estimate=pl.CostEstimate(
            flops=flops,
            transcendentals=b * IN_DIM,                  # one tanh per output element
            bytes_accessed=bytes_accessed,
        ),
    )(x_flat, w1, b1, w2, b2, w3, b3, w4, b4)

    # Upcast only at the boundary (callers expect f32, matching torch).
    return out_flat.astype(jnp.float32).reshape(b, 1, 28, 28)


def init_params(key):
    """Deterministic init mimicking PyTorch Linear default: U(-1/sqrt(in), 1/sqrt(in)).

    Weights are stored as (in, out) -- transpose of torch's (out, in) -- so the
    kernel computes x @ W directly.  Kept in f32 here; prepare_params() casts
    the MXU operands to bf16 once.
    """
    dims = [(IN_DIM, H1), (H1, H2), (H2, H1), (H1, IN_DIM)]
    params = []
    for (fan_in, fan_out) in dims:
        key, kw, kb = jax.random.split(key, 3)
        bound = 1.0 / jnp.sqrt(jnp.float32(fan_in))
        w = jax.random.uniform(kw, (fan_in, fan_out), jnp.float32, -bound, bound)
        bias = jax.random.uniform(kb, (1, fan_out), jnp.float32, -bound, bound)
        params.extend([w, bias])
    return tuple(params)


def _reference_forward(x, params):
    """Pure-JAX f32 reference matching the PyTorch module semantics."""
    (w1, b1, w2, b2, w3, b3, w4, b4) = params
    h = jnp.maximum(x.reshape(x.shape[0], IN_DIM) @ w1 + b1, 0.0)
    z = jnp.maximum(h @ w2 + b2, 0.0)
    d = jnp.maximum(z @ w3 + b3, 0.0)
    y = jax.nn.sigmoid(d @ w4 + b4)
    return y.reshape(-1, 1, 28, 28)


if __name__ == "__main__":
    key = jax.random.PRNGKey(0)
    k_params, k_x = jax.random.split(key)

    params = init_params(k_params)
    prepared = prepare_params(params)           # one-time bf16 weight prep (hoisted)
    x = jax.random.uniform(k_x, (2, 1, 28, 28), jnp.float32)  # MNIST-like, batch=2

    out = fc_autoencoder_forward(x, prepared)
    out = jax.block_until_ready(out)

    ref = _reference_forward(x, params)
    assert out.shape == (2, 1, 28, 28), out.shape
    # bf16 MXU operands / bf16 output with f32 accumulation: small bounded deviation.
    assert jnp.allclose(out, ref, atol=2e-2, rtol=0.0), "mismatch vs reference"

    print("KERNEL_OK")
</pallas_src>

<mosaic_0001>
module attributes {stable_mosaic.version = 11 : i64} {
  func.func @_fc_autoencoder_kernel(%arg0: i32, %arg1: memref<2x784xf32, #tpu.memory_space<vmem>>, %arg2: memref<784x256xbf16, #tpu.memory_space<vmem>>, %arg3: memref<1x256xf32, #tpu.memory_space<vmem>>, %arg4: memref<256x128xbf16, #tpu.memory_space<vmem>>, %arg5: memref<1x128xf32, #tpu.memory_space<vmem>>, %arg6: memref<128x256xbf16, #tpu.memory_space<vmem>>, %arg7: memref<1x256xf32, #tpu.memory_space<vmem>>, %arg8: memref<256x784xbf16, #tpu.memory_space<vmem>>, %arg9: memref<1x784xf32, #tpu.memory_space<vmem>>, %arg10: memref<2x784xbf16, #tpu.memory_space<vmem>>) attributes {dimension_semantics = [#tpu.dimension_semantics<parallel>], iteration_bounds = array<i64: 1>, scalar_prefetch = 0 : i64, scratch_operands = 0 : i64, tpu.core_type = #tpu.core_type<tc>, window_params = [{transform_indices = @transform_0, window_bounds = array<i64: 2, 784>}, {pipeline_mode = #tpu.pipeline_mode<synchronous>, transform_indices = @transform_1, window_bounds = array<i64: 784, 256>}, {pipeline_mode = #tpu.pipeline_mode<synchronous>, transform_indices = @transform_2, window_bounds = array<i64: 1, 256>}, {pipeline_mode = #tpu.pipeline_mode<synchronous>, transform_indices = @transform_3, window_bounds = array<i64: 256, 128>}, {pipeline_mode = #tpu.pipeline_mode<synchronous>, transform_indices = @transform_4, window_bounds = array<i64: 1, 128>}, {pipeline_mode = #tpu.pipeline_mode<synchronous>, transform_indices = @transform_5, window_bounds = array<i64: 128, 256>}, {pipeline_mode = #tpu.pipeline_mode<synchronous>, transform_indices = @transform_6, window_bounds = array<i64: 1, 256>}, {pipeline_mode = #tpu.pipeline_mode<synchronous>, transform_indices = @transform_7, window_bounds = array<i64: 256, 784>}, {pipeline_mode = #tpu.pipeline_mode<synchronous>, transform_indices = @transform_8, window_bounds = array<i64: 1, 784>}, {transform_indices = @transform_9, window_bounds = array<i64: 2, 784>}]} {
    %c0 = arith.constant 0 : index
    %c0_0 = arith.constant 0 : index
    %0 = vector.load %arg1[%c0, %c0_0] : memref<2x784xf32, #tpu.memory_space<vmem>>, vector<2x784xf32>
    %1 = arith.truncf %0 : vector<2x784xf32> to vector<2x784xbf16>
    %c0_1 = arith.constant 0 : index
    %c0_2 = arith.constant 0 : index
    %2 = vector.load %arg2[%c0_1, %c0_2] : memref<784x256xbf16, #tpu.memory_space<vmem>>, vector<784x256xbf16>
    %cst = arith.constant dense<0.000000e+00> : vector<2x256xf32>
    %3 = tpu.matmul %1, %2, %cst {dimension_numbers = #tpu.dot_dimension_numbers<[1], [0], [0], [1], [0, 0, 1, 1], [], []>} : vector<2x784xbf16>, vector<784x256xbf16>, vector<2x256xf32> -> vector<2x256xf32>
    %c0_3 = arith.constant 0 : index
    %c0_4 = arith.constant 0 : index
    %4 = vector.load %arg3[%c0_3, %c0_4] : memref<1x256xf32, #tpu.memory_space<vmem>>, vector<1x256xf32>
    %5 = vector.broadcast %4 : vector<1x256xf32> to vector<2x256xf32>
    %6 = arith.addf %3, %5 : vector<2x256xf32>
    %7 = arith.truncf %6 : vector<2x256xf32> to vector<2x256xbf16>
    %cst_5 = arith.constant 0.000000e+00 : bf16
    %8 = vector.broadcast %cst_5 : bf16 to vector<2x256xbf16>
    %9 = arith.maximumf %7, %8 : vector<2x256xbf16>
    %c0_6 = arith.constant 0 : index
    %c0_7 = arith.constant 0 : index
    %10 = vector.load %arg4[%c0_6, %c0_7] : memref<256x128xbf16, #tpu.memory_space<vmem>>, vector<256x128xbf16>
    %cst_8 = arith.constant dense<0.000000e+00> : vector<2x128xf32>
    %11 = tpu.matmul %9, %10, %cst_8 {dimension_numbers = #tpu.dot_dimension_numbers<[1], [0], [0], [1], [0, 0, 1, 1], [], []>} : vector<2x256xbf16>, vector<256x128xbf16>, vector<2x128xf32> -> vector<2x128xf32>
    %c0_9 = arith.constant 0 : index
    %c0_10 = arith.constant 0 : index
    %12 = vector.load %arg5[%c0_9, %c0_10] : memref<1x128xf32, #tpu.memory_space<vmem>>, vector<1x128xf32>
    %13 = vector.broadcast %12 : vector<1x128xf32> to vector<2x128xf32>
    %14 = arith.addf %11, %13 : vector<2x128xf32>
    %15 = arith.truncf %14 : vector<2x128xf32> to vector<2x128xbf16>
    %cst_11 = arith.constant 0.000000e+00 : bf16
    %16 = vector.broadcast %cst_11 : bf16 to vector<2x128xbf16>
    %17 = arith.maximumf %15, %16 : vector<2x128xbf16>
    %c0_12 = arith.constant 0 : index
    %c0_13 = arith.constant 0 : index
    %18 = vector.load %arg6[%c0_12, %c0_13] : memref<128x256xbf16, #tpu.memory_space<vmem>>, vector<128x256xbf16>
    %cst_14 = arith.constant dense<0.000000e+00> : vector<2x256xf32>
    %19 = tpu.matmul %17, %18, %cst_14 {dimension_numbers = #tpu.dot_dimension_numbers<[1], [0], [0], [1], [0, 0, 1, 1], [], []>} : vector<2x128xbf16>, vector<128x256xbf16>, vector<2x256xf32> -> vector<2x256xf32>
    %c0_15 = arith.constant 0 : index
    %c0_16 = arith.constant 0 : index
    %20 = vector.load %arg7[%c0_15, %c0_16] : memref<1x256xf32, #tpu.memory_space<vmem>>, vector<1x256xf32>
    %21 = vector.broadcast %20 : vector<1x256xf32> to vector<2x256xf32>
    %22 = arith.addf %19, %21 : vector<2x256xf32>
    %23 = arith.truncf %22 : vector<2x256xf32> to vector<2x256xbf16>
    %cst_17 = arith.constant 0.000000e+00 : bf16
    %24 = vector.broadcast %cst_17 : bf16 to vector<2x256xbf16>
    %25 = arith.maximumf %23, %24 : vector<2x256xbf16>
    %c0_18 = arith.constant 0 : index
    %c0_19 = arith.constant 0 : index
    %26 = vector.load %arg8[%c0_18, %c0_19] : memref<256x784xbf16, #tpu.memory_space<vmem>>, vector<256x784xbf16>
    %cst_20 = arith.constant dense<0.000000e+00> : vector<2x784xf32>
    %27 = tpu.matmul %25, %26, %cst_20 {dimension_numbers = #tpu.dot_dimension_numbers<[1], [0], [0], [1], [0, 0, 1, 1], [], []>} : vector<2x256xbf16>, vector<256x784xbf16>, vector<2x784xf32> -> vector<2x784xf32>
    %c0_21 = arith.constant 0 : index
    %c0_22 = arith.constant 0 : index
    %28 = vector.load %arg9[%c0_21, %c0_22] : memref<1x784xf32, #tpu.memory_space<vmem>>, vector<1x784xf32>
    %29 = vector.broadcast %28 : vector<1x784xf32> to vector<2x784xf32>
    %30 = arith.addf %27, %29 : vector<2x784xf32>
    %cst_23 = arith.constant 5.000000e-01 : f32
    %31 = vector.broadcast %cst_23 : f32 to vector<2x784xf32>
    %32 = arith.mulf %31, %30 : vector<2x784xf32>
    %33 = math.tanh %32 : vector<2x784xf32>
    %cst_24 = arith.constant 5.000000e-01 : f32
    %34 = vector.broadcast %cst_24 : f32 to vector<2x784xf32>
    %35 = arith.mulf %34, %33 : vector<2x784xf32>
    %cst_25 = arith.constant 5.000000e-01 : f32
    %36 = vector.broadcast %cst_25 : f32 to vector<2x784xf32>
    %37 = arith.addf %35, %36 : vector<2x784xf32>
    %38 = arith.truncf %37 : vector<2x784xf32> to vector<2x784xbf16>
    %c0_26 = arith.constant 0 : index
    %c0_27 = arith.constant 0 : index
    %39 = vector.load %arg10[%c0_26, %c0_27] : memref<2x784xbf16, #tpu.memory_space<vmem>>, vector<2x784xbf16>
    tpu.vector_store %arg10[%c0_26, %c0_27], %38 {strides = array<i32>} : memref<2x784xbf16, #tpu.memory_space<vmem>>, vector<2x784xbf16>,
    return
  }
  func.func @transform_0(%arg0: i32) -> (i32, i32) {
    %c0_i32 = arith.constant 0 : i32
    %c0_i32_0 = arith.constant 0 : i32
    return %arg0, %c0_i32 : i32, i32
  }
  func.func @transform_1(%arg0: i32) -> (i32, i32) {
    %c0_i32 = arith.constant 0 : i32
    %c0_i32_0 = arith.constant 0 : i32
    %c0_i32_1 = arith.constant 0 : i32
    return %c0_i32, %c0_i32_0 : i32, i32
  }
  func.func @transform_2(%arg0: i32) -> (i32, i32) {
    %c0_i32 = arith.constant 0 : i32
    %c0_i32_0 = arith.constant 0 : i32
    %c0_i32_1 = arith.constant 0 : i32
    return %c0_i32, %c0_i32_0 : i32, i32
  }
  func.func @transform_3(%arg0: i32) -> (i32, i32) {
    %c0_i32 = arith.constant 0 : i32
    %c0_i32_0 = arith.constant 0 : i32
    %c0_i32_1 = arith.constant 0 : i32
    return %c0_i32, %c0_i32_0 : i32, i32
  }
  func.func @transform_4(%arg0: i32) -> (i32, i32) {
    %c0_i32 = arith.constant 0 : i32
    %c0_i32_0 = arith.constant 0 : i32
    %c0_i32_1 = arith.constant 0 : i32
    return %c0_i32, %c0_i32_0 : i32, i32
  }
  func.func @transform_5(%arg0: i32) -> (i32, i32) {
    %c0_i32 = arith.constant 0 : i32
    %c0_i32_0 = arith.constant 0 : i32
    %c0_i32_1 = arith.constant 0 : i32
    return %c0_i32, %c0_i32_0 : i32, i32
  }
  func.func @transform_6(%arg0: i32) -> (i32, i32) {
    %c0_i32 = arith.constant 0 : i32
    %c0_i32_0 = arith.constant 0 : i32
    %c0_i32_1 = arith.constant 0 : i32
    return %c0_i32, %c0_i32_0 : i32, i32
  }
  func.func @transform_7(%arg0: i32) -> (i32, i32) {
    %c0_i32 = arith.constant 0 : i32
    %c0_i32_0 = arith.constant 0 : i32
    %c0_i32_1 = arith.constant 0 : i32
    return %c0_i32, %c0_i32_0 : i32, i32
  }
  func.func @transform_8(%arg0: i32) -> (i32, i32) {
    %c0_i32 = arith.constant 0 : i32
    %c0_i32_0 = arith.constant 0 : i32
    %c0_i32_1 = arith.constant 0 : i32
    return %c0_i32, %c0_i32_0 : i32, i32
  }
  func.func @transform_9(%arg0: i32) -> (i32, i32) {
    %c0_i32 = arith.constant 0 : i32
    %c0_i32_0 = arith.constant 0 : i32
    return %arg0, %c0_i32 : i32, i32
  }
}

</mosaic_0001>

<llo_original>
// kernel: fc_autoencoder_forward.1
$region0: #{fc_autoencoder_forward.1}
  #allocation0 [shape = 'u32[]', space=smem, size = 0x4, offset = 0x4, fixed_abs, tag = 'smem constant byte address 0x4 - core index']
  #allocation1 [shape = 'u32[144,128]{1,0:T(1,128)}', space=vmem, size = 0x12000, scoped, tag = 'internal scratch']
  %s0 = inlined_call_operand.vmem [shape: f32[2,784], index: 0, kind: input, shape index: {}]
  %s1 = inlined_call_operand.vmem [shape: bf16[784,256], index: 1, kind: input, shape index: {}]
  %s2 = inlined_call_operand.vmem [shape: f32[1,256], index: 2, kind: input, shape index: {}]
  %s3 = inlined_call_operand.vmem [shape: bf16[256,128], index: 3, kind: input, shape index: {}]
  %s4 = inlined_call_operand.vmem [shape: f32[1,128], index: 4, kind: input, shape index: {}]
  %s5 = inlined_call_operand.vmem [shape: bf16[128,256], index: 5, kind: input, shape index: {}]
  %s6 = inlined_call_operand.vmem [shape: f32[1,256], index: 6, kind: input, shape index: {}]
  %s7 = inlined_call_operand.vmem [shape: bf16[256,784], index: 7, kind: input, shape index: {}]
  %s8 = inlined_call_operand.vmem [shape: f32[1,784], index: 8, kind: input, shape index: {}]
  %s9 = inlined_call_operand.vmem [shape: bf16[2,784], index: 9, kind: output, shape index: {}]
  %s10 = sld [smem:[#allocation0]]
  $region46: #{fc_autoencoder_forward.1} parent=0
    _
  %s12 = ssub.s32 1, %s10
  %s13 = scalar_select 0, %s12, %s10
  // Predicated region
  $region2: #{fc_autoencoder_forward.1} parent=0 // pred_check
    _
  $region3: #{fc_autoencoder_forward.1} parent=0 // pred_check_branch
    %15 = sbr.rel (0) target = $region5
  $region4: #{fc_autoencoder_forward.1} parent=0 // pred_region
    _
  $region5: #{fc_autoencoder_forward.1} parent=0 // pred_fallthru
    _
  // Predicated region
  $region6: #{fc_autoencoder_forward.1} parent=0 // pred_check
    _
  $region7: #{fc_autoencoder_forward.1} parent=0 // pred_check_branch
    %17 = sbr.rel (0) target = $region9
  $region8: #{fc_autoencoder_forward.1} parent=0 // pred_region
    _
  $region9: #{fc_autoencoder_forward.1} parent=0 // pred_fallthru
    _
  // Predicated region
  $region10: #{fc_autoencoder_forward.1} parent=0 // pred_check
    _
  $region11: #{fc_autoencoder_forward.1} parent=0 // pred_check_branch
    %19 = sbr.rel (0) target = $region13
  $region12: #{fc_autoencoder_forward.1} parent=0 // pred_region
    _
  $region13: #{fc_autoencoder_forward.1} parent=0 // pred_fallthru
    _
  // Predicated region
  $region14: #{fc_autoencoder_forward.1} parent=0 // pred_check
    _
  $region15: #{fc_autoencoder_forward.1} parent=0 // pred_check_branch
    %21 = sbr.rel (0) target = $region17
  $region16: #{fc_autoencoder_forward.1} parent=0 // pred_region
    _
  $region17: #{fc_autoencoder_forward.1} parent=0 // pred_fallthru
    _
  // Predicated region
  $region18: #{fc_autoencoder_forward.1} parent=0 // pred_check
    _
  $region19: #{fc_autoencoder_forward.1} parent=0 // pred_check_branch
    %23 = sbr.rel (0) target = $region21
  $region20: #{fc_autoencoder_forward.1} parent=0 // pred_region
    _
  $region21: #{fc_autoencoder_forward.1} parent=0 // pred_fallthru
    _
  // Predicated region
  $region22: #{fc_autoencoder_forward.1} parent=0 // pred_check
    _
  $region23: #{fc_autoencoder_forward.1} parent=0 // pred_check_branch
    %25 = sbr.rel (0) target = $region25
  $region24: #{fc_autoencoder_forward.1} parent=0 // pred_region
    _
  $region25: #{fc_autoencoder_forward.1} parent=0 // pred_fallthru
    _
  // Predicated region
  $region26: #{fc_autoencoder_forward.1} parent=0 // pred_check
    _
  $region27: #{fc_autoencoder_forward.1} parent=0 // pred_check_branch
    %27 = sbr.rel (0) target = $region29
  $region28: #{fc_autoencoder_forward.1} parent=0 // pred_region
    _
  $region29: #{fc_autoencoder_forward.1} parent=0 // pred_fallthru
    _
  // Predicated region
  $region30: #{fc_autoencoder_forward.1} parent=0 // pred_check
    _
  $region31: #{fc_autoencoder_forward.1} parent=0 // pred_check_branch
    %29 = sbr.rel (0) target = $region33
  $region32: #{fc_autoencoder_forward.1} parent=0 // pred_region
    _
  $region33: #{fc_autoencoder_forward.1} parent=0 // pred_fallthru
    _
  // Predicated region
  $region34: #{fc_autoencoder_forward.1} parent=0 // pred_check
    _
  $region35: #{fc_autoencoder_forward.1} parent=0 // pred_check_branch
    %31 = sbr.rel (0) target = $region37
  $region36: #{fc_autoencoder_forward.1} parent=0 // pred_region
    _
  $region37: #{fc_autoencoder_forward.1} parent=0 // pred_fallthru
    _
  %v33 = vld [vmem:[%s0] sm:$0xff]
  %v34 = vld [vmem:[%s0 + $0x8] sm:$0x3f]
  %v37 = vcombine.high %v33, %v33
  %v39 = vunpack.c.l.s4 1983009808
  %v40 = vunpack.c.0.s8 %v39
  %v41 = vlaneseq
  %v42 = vshrl.u32 %v41, 7
  %v43 = vsub.s32 %v40, %v42
  %v44 = vrot.slane %v33, %v43
  %v46 = vunpack.c.l.s4 1983009808
  %v47 = vunpack.c.0.s8 %v46
  %v48 = vlaneseq
  %v49 = vshrl.u32 %v48, 7
  %v50 = vsub.s32 %v47, %v49
  %v51 = vrot.slane %v37, %v50
  %v52 = vcombine.high %v44, %v44
  %v53 = vcombine.high %v51, %v51
  %v54 = vcombine.high %v34, %v34
  %v56 = vunpack.c.l.s4 1983009808
  %v57 = vunpack.c.0.s8 %v56
  %v58 = vlaneseq
  %v59 = vshrl.u32 %v58, 7
  %v60 = vsub.s32 %v57, %v59
  %v61 = vrot.slane %v34, %v60
  %v63 = vunpack.c.l.s4 1983009808
  %v64 = vunpack.c.0.s8 %v63
  %v65 = vlaneseq
  %v66 = vshrl.u32 %v65, 7
  %v67 = vsub.s32 %v64, %v66
  %v68 = vrot.slane %v54, %v67
  %v69 = vcombine.high %v61, %v61
  %v77 = vpack.c.bf16 %v44, %v44
  %v78 = vpack.c.bf16 %v52, %v52
  %v79 = vpack.c.bf16 %v51, %v51
  %v80 = vpack.c.bf16 %v53, %v53
  %v81 = vpack.c.bf16 %v61, %v61
  %v82 = vpack.c.bf16 %v69, %v69
  %v83 = vpack.c.bf16 %v68, %v68
  %v84 = vld [vmem:[%s1] sm:$0xff]
  %v85 = vld [vmem:[%s1 + $0x8] sm:$0xff]
  %v86 = vld [vmem:[%s1 + $0x10] sm:$0xff]
  %v87 = vld [vmem:[%s1 + $0x18] sm:$0xff]
  %v88 = vld [vmem:[%s1 + $0x20] sm:$0xff]
  %v89 = vld [vmem:[%s1 + $0x28] sm:$0xff]
  %v90 = vld [vmem:[%s1 + $0x30] sm:$0xff]
  %v91 = vld [vmem:[%s1 + $0x38] sm:$0xff]
  %v92 = vld [vmem:[%s1 + $0x40] sm:$0xff]
  %v93 = vld [vmem:[%s1 + $0x48] sm:$0xff]
  %v94 = vld [vmem:[%s1 + $0x50] sm:$0xff]
  %v95 = vld [vmem:[%s1 + $0x58] sm:$0xff]
  %v96 = vld [vmem:[%s1 + $0x60] sm:$0xff]
  %v97 = vld [vmem:[%s1 + $0x68] sm:$0xff]
  %v98 = vld [vmem:[%s1 + $0x70] sm:$0xff]
  %v99 = vld [vmem:[%s1 + $0x78] sm:$0xff]
  %v100 = vld [vmem:[%s1 + $0x80] sm:$0xff]
  %v101 = vld [vmem:[%s1 + $0x88] sm:$0xff]
  %v102 = vld [vmem:[%s1 + $0x90] sm:$0xff]
  %v103 = vld [vmem:[%s1 + $0x98] sm:$0xff]
  %v104 = vld [vmem:[%s1 + $0xa0] sm:$0xff]
  %v105 = vld [vmem:[%s1 + $0xa8] sm:$0xff]
  %v106 = vld [vmem:[%s1 + $0xb0] sm:$0xff]
  %v107 = vld [vmem:[%s1 + $0xb8] sm:$0xff]
  %v108 = vld [vmem:[%s1 + $0xc0] sm:$0xff]
  %v109 = vld [vmem:[%s1 + $0xc8] sm:$0xff]
  %v110 = vld [vmem:[%s1 + $0xd0] sm:$0xff]
  %v111 = vld [vmem:[%s1 + $0xd8] sm:$0xff]
  %v112 = vld [vmem:[%s1 + $0xe0] sm:$0xff]
  %v113 = vld [vmem:[%s1 + $0xe8] sm:$0xff]
  %v114 = vld [vmem:[%s1 + $0xf0] sm:$0xff]
  %v115 = vld [vmem:[%s1 + $0xf8] sm:$0xff]
  %v116 = vld [vmem:[%s1 + $0x100] sm:$0xff]
  %v117 = vld [vmem:[%s1 + $0x108] sm:$0xff]
  %v118 = vld [vmem:[%s1 + $0x110] sm:$0xff]
  %v119 = vld [vmem:[%s1 + $0x118] sm:$0xff]
  %v120 = vld [vmem:[%s1 + $0x120] sm:$0xff]
  %v121 = vld [vmem:[%s1 + $0x128] sm:$0xff]
  %v122 = vld [vmem:[%s1 + $0x130] sm:$0xff]
  %v123 = vld [vmem:[%s1 + $0x138] sm:$0xff]
  %v124 = vld [vmem:[%s1 + $0x140] sm:$0xff]
  %v125 = vld [vmem:[%s1 + $0x148] sm:$0xff]
  %v126 = vld [vmem:[%s1 + $0x150] sm:$0xff]
  %v127 = vld [vmem:[%s1 + $0x158] sm:$0xff]
  %v128 = vld [vmem:[%s1 + $0x160] sm:$0xff]
  %v129 = vld [vmem:[%s1 + $0x168] sm:$0xff]
  %v130 = vld [vmem:[%s1 + $0x170] sm:$0xff]
  %v131 = vld [vmem:[%s1 + $0x178] sm:$0xff]
  %v132 = vld [vmem:[%s1 + $0x180] sm:$0xff]
  %v133 = vld [vmem:[%s1 + $0x188] sm:$0xff]
  %v134 = vld [vmem:[%s1 + $0x190] sm:$0xff]
  %v135 = vld [vmem:[%s1 + $0x198] sm:$0xff]
  %v136 = vld [vmem:[%s1 + $0x1a0] sm:$0xff]
  %v137 = vld [vmem:[%s1 + $0x1a8] sm:$0xff]
  %v138 = vld [vmem:[%s1 + $0x1b0] sm:$0xff]
  %v139 = vld [vmem:[%s1 + $0x1b8] sm:$0xff]
  %v140 = vld [vmem:[%s1 + $0x1c0] sm:$0xff]
  %v141 = vld [vmem:[%s1 + $0x1c8] sm:$0xff]
  %v142 = vld [vmem:[%s1 + $0x1d0] sm:$0xff]
  %v143 = vld [vmem:[%s1 + $0x1d8] sm:$0xff]
  %v144 = vld [vmem:[%s1 + $0x1e0] sm:$0xff]
  %v145 = vld [vmem:[%s1 + $0x1e8] sm:$0xff]
  %v146 = vld [vmem:[%s1 + $0x1f0] sm:$0xff]
  %v147 = vld [vmem:[%s1 + $0x1f8] sm:$0xff]
  %v148 = vld [vmem:[%s1 + $0x200] sm:$0xff]
  %v149 = vld [vmem:[%s1 + $0x208] sm:$0xff]
  %v150 = vld [vmem:[%s1 + $0x210] sm:$0xff]
  %v151 = vld [vmem:[%s1 + $0x218] sm:$0xff]
  %v152 = vld [vmem:[%s1 + $0x220] sm:$0xff]
  %v153 = vld [vmem:[%s1 + $0x228] sm:$0xff]
  %v154 = vld [vmem:[%s1 + $0x230] sm:$0xff]
  %v155 = vld [vmem:[%s1 + $0x238] sm:$0xff]
  %v156 = vld [vmem:[%s1 + $0x240] sm:$0xff]
  %v157 = vld [vmem:[%s1 + $0x248] sm:$0xff]
  %v158 = vld [vmem:[%s1 + $0x250] sm:$0xff]
  %v159 = vld [vmem:[%s1 + $0x258] sm:$0xff]
  %v160 = vld [vmem:[%s1 + $0x260] sm:$0xff]
  %v161 = vld [vmem:[%s1 + $0x268] sm:$0xff]
  %v162 = vld [vmem:[%s1 + $0x270] sm:$0xff]
  %v163 = vld [vmem:[%s1 + $0x278] sm:$0xff]
  %v164 = vld [vmem:[%s1 + $0x280] sm:$0xff]
  %v165 = vld [vmem:[%s1 + $0x288] sm:$0xff]
  %v166 = vld [vmem:[%s1 + $0x290] sm:$0xff]
  %v167 = vld [vmem:[%s1 + $0x298] sm:$0xff]
  %v168 = vld [vmem:[%s1 + $0x2a0] sm:$0xff]
  %v169 = vld [vmem:[%s1 + $0x2a8] sm:$0xff]
  %v170 = vld [vmem:[%s1 + $0x2b0] sm:$0xff]
  %v171 = vld [vmem:[%s1 + $0x2b8] sm:$0xff]
  %v172 = vld [vmem:[%s1 + $0x2c0] sm:$0xff]
  %v173 = vld [vmem:[%s1 + $0x2c8] sm:$0xff]
  %v174 = vld [vmem:[%s1 + $0x2d0] sm:$0xff]
  %v175 = vld [vmem:[%s1 + $0x2d8] sm:$0xff]
  %v176 = vld [vmem:[%s1 + $0x2e0] sm:$0xff]
  %v177 = vld [vmem:[%s1 + $0x2e8] sm:$0xff]
  %v178 = vld [vmem:[%s1 + $0x2f0] sm:$0xff]
  %v179 = vld [vmem:[%s1 + $0x2f8] sm:$0xff]
  %v180 = vld [vmem:[%s1 + $0x300] sm:$0xff]
  %v181 = vld [vmem:[%s1 + $0x308] sm:$0xff]
  %v182 = vld [vmem:[%s2] sm:$0x3]
  %v184 = vlaneseq
  %v185 = vshrl.u32 %v184, 7
  %v186 = vsub.s32 0, %v185
  %v187 = vrot.slane %v182, %v186
  %v188 = vlaneseq
  %v189 = vshrl.u32 %v188, 7
  %v190 = vsub.s32 1, %v189
  %v191 = vrot.slane %v182, %v190
  %v292 = vunpack.c.l.b16 %v84
  %v293 = vunpack.c.h.b16 %v84
  %v294 = vunpack.c.l.b16 %v85
  %v295 = vunpack.c.h.b16 %v85
  %v296 = vunpack.c.l.b16 %v86
  %v297 = vunpack.c.h.b16 %v86
  %v298 = vunpack.c.l.b16 %v87
  %v299 = vunpack.c.h.b16 %v87
  %v300 = vunpack.c.l.b16 %v88
  %v301 = vunpack.c.h.b16 %v88
  %v302 = vunpack.c.l.b16 %v89
  %v303 = vunpack.c.h.b16 %v89
  %v304 = vunpack.c.l.b16 %v90
  %v305 = vunpack.c.h.b16 %v90
  %v306 = vunpack.c.l.b16 %v91
  %v307 = vunpack.c.h.b16 %v91
  %v308 = vunpack.c.l.b16 %v92
  %v309 = vunpack.c.h.b16 %v92
  %v310 = vunpack.c.l.b16 %v93
  %v311 = vunpack.c.h.b16 %v93
  %v312 = vunpack.c.l.b16 %v94
  %v313 = vunpack.c.h.b16 %v94
  %v314 = vunpack.c.l.b16 %v95
  %v315 = vunpack.c.h.b16 %v95
  %v316 = vunpack.c.l.b16 %v96
  %v317 = vunpack.c.h.b16 %v96
  %v318 = vunpack.c.l.b16 %v97
  %v319 = vunpack.c.h.b16 %v97
  %v320 = vunpack.c.l.b16 %v98
  %v321 = vunpack.c.h.b16 %v98
  %v322 = vunpack.c.l.b16 %v99
  %v323 = vunpack.c.h.b16 %v99
  %v324 = vunpack.c.l.b16 %v100
  %v325 = vunpack.c.h.b16 %v100
  %v326 = vunpack.c.l.b16 %v101
  %v327 = vunpack.c.h.b16 %v101
  %v328 = vunpack.c.l.b16 %v102
  %v329 = vunpack.c.h.b16 %v102
  %v330 = vunpack.c.l.b16 %v103
  %v331 = vunpack.c.h.b16 %v103
  %v332 = vunpack.c.l.b16 %v104
  %v333 = vunpack.c.h.b16 %v104
  %v334 = vunpack.c.l.b16 %v105
  %v335 = vunpack.c.h.b16 %v105
  %v336 = vunpack.c.l.b16 %v106
  %v337 = vunpack.c.h.b16 %v106
  %v338 = vunpack.c.l.b16 %v107
  %v339 = vunpack.c.h.b16 %v107
  %v340 = vunpack.c.l.b16 %v108
  %v341 = vunpack.c.h.b16 %v108
  %v342 = vunpack.c.l.b16 %v109
  %v343 = vunpack.c.h.b16 %v109
  %v344 = vunpack.c.l.b16 %v110
  %v345 = vunpack.c.h.b16 %v110
  %v346 = vunpack.c.l.b16 %v111
  %v347 = vunpack.c.h.b16 %v111
  %v348 = vunpack.c.l.b16 %v112
  %v349 = vunpack.c.h.b16 %v112
  %v350 = vunpack.c.l.b16 %v113
  %v351 = vunpack.c.h.b16 %v113
  %v352 = vunpack.c.l.b16 %v114
  %v353 = vunpack.c.h.b16 %v114
  %v354 = vunpack.c.l.b16 %v115
  %v355 = vunpack.c.h.b16 %v115
  %v356 = vunpack.c.l.b16 %v116
  %v357 = vunpack.c.h.b16 %v116
  %v358 = vunpack.c.l.b16 %v117
  %v359 = vunpack.c.h.b16 %v117
  %v360 = vunpack.c.l.b16 %v118
  %v361 = vunpack.c.h.b16 %v118
  %v362 = vunpack.c.l.b16 %v119
  %v363 = vunpack.c.h.b16 %v119
  %v364 = vunpack.c.l.b16 %v120
  %v365 = vunpack.c.h.b16 %v120
  %v366 = vunpack.c.l.b16 %v121
  %v367 = vunpack.c.h.b16 %v121
  %v368 = vunpack.c.l.b16 %v122
  %v369 = vunpack.c.h.b16 %v122
  %v370 = vunpack.c.l.b16 %v123
  %v371 = vunpack.c.h.b16 %v123
  %v372 = vunpack.c.l.b16 %v124
  %v373 = vunpack.c.h.b16 %v124
  %v374 = vunpack.c.l.b16 %v125
  %v375 = vunpack.c.h.b16 %v125
  %v376 = vunpack.c.l.b16 %v126
  %v377 = vunpack.c.h.b16 %v126
  %v378 = vunpack.c.l.b16 %v127
  %v379 = vunpack.c.h.b16 %v127
  %v380 = vunpack.c.l.b16 %v128
  %v381 = vunpack.c.h.b16 %v128
  %v382 = vunpack.c.l.b16 %v129
  %v383 = vunpack.c.h.b16 %v129
  %v384 = vunpack.c.l.b16 %v130
  %v385 = vunpack.c.h.b16 %v130
  %v386 = vunpack.c.l.b16 %v131
  %v387 = vunpack.c.h.b16 %v131
  %v388 = vunpack.c.l.b16 %v132
  %v389 = vunpack.c.h.b16 %v132
  %v390 = vunpack.c.l.b16 %v133
  %v391 = vunpack.c.h.b16 %v133
  %v392 = vunpack.c.l.b16 %v134
  %v393 = vunpack.c.h.b16 %v134
  %v394 = vunpack.c.l.b16 %v135
  %v395 = vunpack.c.h.b16 %v135
  %v396 = vunpack.c.l.b16 %v136
  %v397 = vunpack.c.h.b16 %v136
  %v398 = vunpack.c.l.b16 %v137
  %v399 = vunpack.c.h.b16 %v137
  %v400 = vunpack.c.l.b16 %v138
  %v401 = vunpack.c.h.b16 %v138
  %v402 = vunpack.c.l.b16 %v139
  %v403 = vunpack.c.h.b16 %v139
  %v404 = vunpack.c.l.b16 %v140
  %v405 = vunpack.c.h.b16 %v140
  %v406 = vunpack.c.l.b16 %v141
  %v407 = vunpack.c.h.b16 %v141
  %v408 = vunpack.c.l.b16 %v142
  %v409 = vunpack.c.h.b16 %v142
  %v410 = vunpack.c.l.b16 %v143
  %v411 = vunpack.c.h.b16 %v143
  %v412 = vunpack.c.l.b16 %v144
  %v413 = vunpack.c.h.b16 %v144
  %v414 = vunpack.c.l.b16 %v145
  %v415 = vunpack.c.h.b16 %v145
  %v416 = vunpack.c.l.b16 %v146
  %v417 = vunpack.c.h.b16 %v146
  %v418 = vunpack.c.l.b16 %v147
  %v419 = vunpack.c.h.b16 %v147
  %v420 = vunpack.c.l.b16 %v148
  %v421 = vunpack.c.h.b16 %v148
  %v422 = vunpack.c.l.b16 %v149
  %v423 = vunpack.c.h.b16 %v149
  %v424 = vunpack.c.l.b16 %v150
  %v425 = vunpack.c.h.b16 %v150
  %v426 = vunpack.c.l.b16 %v151
  %v427 = vunpack.c.h.b16 %v151
  %v428 = vunpack.c.l.b16 %v152
  %v429 = vunpack.c.h.b16 %v152
  %v430 = vunpack.c.l.b16 %v153
  %v431 = vunpack.c.h.b16 %v153
  %v432 = vunpack.c.l.b16 %v154
  %v433 = vunpack.c.h.b16 %v154
  %v434 = vunpack.c.l.b16 %v155
  %v435 = vunpack.c.h.b16 %v155
  %v436 = vunpack.c.l.b16 %v156
  %v437 = vunpack.c.h.b16 %v156
  %v438 = vunpack.c.l.b16 %v157
  %v439 = vunpack.c.h.b16 %v157
  %v440 = vunpack.c.l.b16 %v158
  %v441 = vunpack.c.h.b16 %v158
  %v442 = vunpack.c.l.b16 %v159
  %v443 = vunpack.c.h.b16 %v159
  %v444 = vunpack.c.l.b16 %v160
  %v445 = vunpack.c.h.b16 %v160
  %v446 = vunpack.c.l.b16 %v161
  %v447 = vunpack.c.h.b16 %v161
  %v448 = vunpack.c.l.b16 %v162
  %v449 = vunpack.c.h.b16 %v162
  %v450 = vunpack.c.l.b16 %v163
  %v451 = vunpack.c.h.b16 %v163
  %v452 = vunpack.c.l.b16 %v164
  %v453 = vunpack.c.h.b16 %v164
  %v454 = vunpack.c.l.b16 %v165
  %v455 = vunpack.c.h.b16 %v165
  %v456 = vunpack.c.l.b16 %v166
  %v457 = vunpack.c.h.b16 %v166
  %v458 = vunpack.c.l.b16 %v167
  %v459 = vunpack.c.h.b16 %v167
  %v460 = vunpack.c.l.b16 %v168
  %v461 = vunpack.c.h.b16 %v168
  %v462 = vunpack.c.l.b16 %v169
  %v463 = vunpack.c.h.b16 %v169
  %v464 = vunpack.c.l.b16 %v170
  %v465 = vunpack.c.h.b16 %v170
  %v466 = vunpack.c.l.b16 %v171
  %v467 = vunpack.c.h.b16 %v171
  %v468 = vunpack.c.l.b16 %v172
  %v469 = vunpack.c.h.b16 %v172
  %v470 = vunpack.c.l.b16 %v173
  %v471 = vunpack.c.h.b16 %v173
  %v472 = vunpack.c.l.b16 %v174
  %v473 = vunpack.c.h.b16 %v174
  %v474 = vunpack.c.l.b16 %v175
  %v475 = vunpack.c.h.b16 %v175
  %v476 = vunpack.c.l.b16 %v176
  %v477 = vunpack.c.h.b16 %v176
  %v478 = vunpack.c.l.b16 %v177
  %v479 = vunpack.c.h.b16 %v177
  %v480 = vunpack.c.l.b16 %v178
  %v481 = vunpack.c.h.b16 %v178
  %v482 = vunpack.c.l.b16 %v179
  %v483 = vunpack.c.h.b16 %v179
  %v484 = vunpack.c.l.b16 %v180
  %v485 = vunpack.c.h.b16 %v180
  %v486 = vunpack.c.l.b16 %v181
  %v487 = vunpack.c.h.b16 %v181
  %v488 = vpack.c.b16 %v294, %v292
  %v489 = vpack.c.b16 %v295, %v293
  %v490 = vpack.c.b16 %v298, %v296
  %v491 = vpack.c.b16 %v299, %v297
  %v492 = vpack.c.b16 %v302, %v300
  %v493 = vpack.c.b16 %v303, %v301
  %v494 = vpack.c.b16 %v306, %v304
  %v495 = vpack.c.b16 %v307, %v305
  %v496 = vpack.c.b16 %v310, %v308
  %v497 = vpack.c.b16 %v311, %v309
  %v498 = vpack.c.b16 %v314, %v312
  %v499 = vpack.c.b16 %v315, %v313
  %v500 = vpack.c.b16 %v318, %v316
  %v501 = vpack.c.b16 %v319, %v317
  %v502 = vpack.c.b16 %v322, %v320
  %v503 = vpack.c.b16 %v323, %v321
  %v504 = vpack.c.b16 %v326, %v324
  %v505 = vpack.c.b16 %v327, %v325
  %v506 = vpack.c.b16 %v330, %v328
  %v507 = vpack.c.b16 %v331, %v329
  %v508 = vpack.c.b16 %v334, %v332
  %v509 = vpack.c.b16 %v335, %v333
  %v510 = vpack.c.b16 %v338, %v336
  %v511 = vpack.c.b16 %v339, %v337
  %v512 = vpack.c.b16 %v342, %v340
  %v513 = vpack.c.b16 %v343, %v341
  %v514 = vpack.c.b16 %v346, %v344
  %v515 = vpack.c.b16 %v347, %v345
  %v516 = vpack.c.b16 %v350, %v348
  %v517 = vpack.c.b16 %v351, %v349
  %v518 = vpack.c.b16 %v354, %v352
  %v519 = vpack.c.b16 %v355, %v353
  %v520 = vpack.c.b16 %v358, %v356
  %v521 = vpack.c.b16 %v359, %v357
  %v522 = vpack.c.b16 %v362, %v360
  %v523 = vpack.c.b16 %v363, %v361
  %v524 = vpack.c.b16 %v366, %v364
  %v525 = vpack.c.b16 %v367, %v365
  %v526 = vpack.c.b16 %v370, %v368
  %v527 = vpack.c.b16 %v371, %v369
  %v528 = vpack.c.b16 %v374, %v372
  %v529 = vpack.c.b16 %v375, %v373
  %v530 = vpack.c.b16 %v378, %v376
  %v531 = vpack.c.b16 %v379, %v377
  %v532 = vpack.c.b16 %v382, %v380
  %v533 = vpack.c.b16 %v383, %v381
  %v534 = vpack.c.b16 %v386, %v384
  %v535 = vpack.c.b16 %v387, %v385
  %v536 = vpack.c.b16 %v390, %v388
  %v537 = vpack.c.b16 %v391, %v389
  %v538 = vpack.c.b16 %v394, %v392
  %v539 = vpack.c.b16 %v395, %v393
  %v540 = vpack.c.b16 %v398, %v396
  %v541 = vpack.c.b16 %v399, %v397
  %v542 = vpack.c.b16 %v402, %v400
  %v543 = vpack.c.b16 %v403, %v401
  %v544 = vpack.c.b16 %v406, %v404
  %v545 = vpack.c.b16 %v407, %v405
  %v546 = vpack.c.b16 %v410, %v408
  %v547 = vpack.c.b16 %v411, %v409
  %v548 = vpack.c.b16 %v414, %v412
  %v549 = vpack.c.b16 %v415, %v413
  %v550 = vpack.c.b16 %v418, %v416
  %v551 = vpack.c.b16 %v419, %v417
  %v552 = vpack.c.b16 %v422, %v420
  %v553 = vpack.c.b16 %v423, %v421
  %v554 = vpack.c.b16 %v426, %v424
  %v555 = vpack.c.b16 %v427, %v425
  %v556 = vpack.c.b16 %v430, %v428
  %v557 = vpack.c.b16 %v431, %v429
  %v558 = vpack.c.b16 %v434, %v432
  %v559 = vpack.c.b16 %v435, %v433
  %v560 = vpack.c.b16 %v438, %v436
  %v561 = vpack.c.b16 %v439, %v437
  %v562 = vpack.c.b16 %v442, %v440
  %v563 = vpack.c.b16 %v443, %v441
  %v564 = vpack.c.b16 %v446, %v444
  %v565 = vpack.c.b16 %v447, %v445
  %v566 = vpack.c.b16 %v450, %v448
  %v567 = vpack.c.b16 %v451, %v449
  %v568 = vpack.c.b16 %v454, %v452
  %v569 = vpack.c.b16 %v455, %v453
  %v570 = vpack.c.b16 %v458, %v456
  %v571 = vpack.c.b16 %v459, %v457
  %v572 = vpack.c.b16 %v462, %v460
  %v573 = vpack.c.b16 %v463, %v461
  %v574 = vpack.c.b16 %v466, %v464
  %v575 = vpack.c.b16 %v467, %v465
  %v576 = vpack.c.b16 %v470, %v468
  %v577 = vpack.c.b16 %v471, %v469
  %v578 = vpack.c.b16 %v474, %v472
  %v579 = vpack.c.b16 %v475, %v473
  %v580 = vpack.c.b16 %v478, %v476
  %v581 = vpack.c.b16 %v479, %v477
  %v582 = vpack.c.b16 %v482, %v480
  %v583 = vpack.c.b16 %v483, %v481
  %v584 = vpack.c.b16 %v486, %v484
  %v585 = vpack.c.b16 %v487, %v485
  %vm684 = vcmask 130048
  %v686 = vsel %vm684, %v83, 0
  %688 = vmatprep.subr.bf16.mxu0 %v503
  %689 = vmatpush1.bf16.msra.mxu0 %v502
  %690 = vmatprep.subr.bf16.mxu0 %v501
  %691 = vmatpush1.bf16.msra.mxu0 %v500
  %692 = vmatprep.subr.bf16.mxu0 %v499
  %693 = vmatpush1.bf16.msra.mxu0 %v498
  %694 = vmatprep.subr.bf16.mxu0 %v497
  %695 = vmatpush1.bf16.msra.mxu0 %v496
  %696 = vmatprep.subr.bf16.mxu0 %v495
  %697 = vmatpush1.bf16.msra.mxu0 %v494
  %698 = vmatprep.subr.bf16.mxu0 %v493
  %699 = vmatpush1.bf16.msra.mxu0 %v492
  %700 = vmatprep.subr.bf16.mxu0 %v491
  %701 = vmatpush1.bf16.msra.mxu0 %v490
  %702 = vmatprep.subr.bf16.mxu0 %v489
  %703 = vmatpush1.bf16.msra.mxu0 %v488
  %704 = vmatprep.subr.bf16.mxu0 %v519
  %705 = vmatpush2.bf16.msra.mxu0 %v518
  %706 = vmatprep.subr.bf16.mxu0 %v517
  %707 = vmatpush2.bf16.msra.mxu0 %v516
  %708 = vmatprep.subr.bf16.mxu0 %v515
  %709 = vmatpush2.bf16.msra.mxu0 %v514
  %710 = vmatprep.subr.bf16.mxu0 %v513
  %711 = vmatpush2.bf16.msra.mxu0 %v512
  %712 = vmatprep.subr.bf16.mxu0 %v511
  %713 = vmatpush2.bf16.msra.mxu0 %v510
  %714 = vmatprep.subr.bf16.mxu0 %v509
  %715 = vmatpush2.bf16.msra.mxu0 %v508
  %716 = vmatprep.subr.bf16.mxu0 %v507
  %717 = vmatpush2.bf16.msra.mxu0 %v506
  %718 = vmatprep.subr.bf16.mxu0 %v505
  %719 = vmatpush2.bf16.msra.mxu0 %v504
  %720 = vmatprep.mubr.bf16.mxu0 %v78
  %721 = vmatmul.mubr.bf16.gmra.mxu0 %v77
  %v722 = vpop.f32.mrf.mxu0
  %v723 = vadd.f32 %v187, %v722
  %v724 = vpop.f32.mrf.mxu0
  %v725 = vadd.f32 %v191, %v724
  %v726 = vpop.f32.mrf.mxu0
  %v727 = vpop.f32.mrf.mxu0
  %728 = vdwg.mxu0
  %729 = vmatprep.subr.bf16.mxu0 %v535
  %730 = vmatpush1.bf16.msra.mxu0 %v534
  %731 = vmatprep.subr.bf16.mxu0 %v533
  %732 = vmatpush1.bf16.msra.mxu0 %v532
  %733 = vmatprep.subr.bf16.mxu0 %v531
  %734 = vmatpush1.bf16.msra.mxu0 %v530
  %735 = vmatprep.subr.bf16.mxu0 %v529
  %736 = vmatpush1.bf16.msra.mxu0 %v528
  %737 = vmatprep.subr.bf16.mxu0 %v527
  %738 = vmatpush1.bf16.msra.mxu0 %v526
  %739 = vmatprep.subr.bf16.mxu0 %v525
  %740 = vmatpush1.bf16.msra.mxu0 %v524
  %741 = vmatprep.subr.bf16.mxu0 %v523
  %742 = vmatpush1.bf16.msra.mxu0 %v522
  %743 = vmatprep.subr.bf16.mxu0 %v521
  %744 = vmatpush1.bf16.msra.mxu0 %v520
  %745 = vmatprep.subr.bf16.mxu0 %v551
  %746 = vmatpush2.bf16.msra.mxu0 %v550
  %747 = vmatprep.subr.bf16.mxu0 %v549
  %748 = vmatpush2.bf16.msra.mxu0 %v548
  %749 = vmatprep.subr.bf16.mxu0 %v547
  %750 = vmatpush2.bf16.msra.mxu0 %v546
  %751 = vmatprep.subr.bf16.mxu0 %v545
  %752 = vmatpush2.bf16.msra.mxu0 %v544
  %753 = vmatprep.subr.bf16.mxu0 %v543
  %754 = vmatpush2.bf16.msra.mxu0 %v542
  %755 = vmatprep.subr.bf16.mxu0 %v541
  %756 = vmatpush2.bf16.msra.mxu0 %v540
  %757 = vmatprep.subr.bf16.mxu0 %v539
  %758 = vmatpush2.bf16.msra.mxu0 %v538
  %759 = vmatprep.subr.bf16.mxu0 %v537
  %760 = vmatpush2.bf16.msra.mxu0 %v536
  %761 = vmatprep.mubr.bf16.mxu0 %v80
  %762 = vmatmul.mubr.bf16.gmra.mxu0 %v79
  %v763 = vpop.f32.mrf.mxu0
  %v764 = vadd.f32 %v723, %v763
  %v765 = vpop.f32.mrf.mxu0
  %v766 = vadd.f32 %v725, %v765
  %v767 = vpop.f32.mrf.mxu0
  %v768 = vpop.f32.mrf.mxu0
  %769 = vdwg.mxu0
  %770 = vmatprep.subr.bf16.mxu0 %v567
  %771 = vmatpush1.bf16.msra.mxu0 %v566
  %772 = vmatprep.subr.bf16.mxu0 %v565
  %773 = vmatpush1.bf16.msra.mxu0 %v564
  %774 = vmatprep.subr.bf16.mxu0 %v563
  %775 = vmatpush1.bf16.msra.mxu0 %v562
  %776 = vmatprep.subr.bf16.mxu0 %v561
  %777 = vmatpush1.bf16.msra.mxu0 %v560
  %778 = vmatprep.subr.bf16.mxu0 %v559
  %779 = vmatpush1.bf16.msra.mxu0 %v558
  %780 = vmatprep.subr.bf16.mxu0 %v557
  %781 = vmatpush1.bf16.msra.mxu0 %v556
  %782 = vmatprep.subr.bf16.mxu0 %v555
  %783 = vmatpush1.bf16.msra.mxu0 %v554
  %784 = vmatprep.subr.bf16.mxu0 %v553
  %785 = vmatpush1.bf16.msra.mxu0 %v552
  %786 = vmatprep.subr.bf16.mxu0 %v583
  %787 = vmatpush2.bf16.msra.mxu0 %v582
  %788 = vmatprep.subr.bf16.mxu0 %v581
  %789 = vmatpush2.bf16.msra.mxu0 %v580
  %790 = vmatprep.subr.bf16.mxu0 %v579
  %791 = vmatpush2.bf16.msra.mxu0 %v578
  %792 = vmatprep.subr.bf16.mxu0 %v577
  %793 = vmatpush2.bf16.msra.mxu0 %v576
  %794 = vmatprep.subr.bf16.mxu0 %v575
  %795 = vmatpush2.bf16.msra.mxu0 %v574
  %796 = vmatprep.subr.bf16.mxu0 %v573
  %797 = vmatpush2.bf16.msra.mxu0 %v572
  %798 = vmatprep.subr.bf16.mxu0 %v571
  %799 = vmatpush2.bf16.msra.mxu0 %v570
  %800 = vmatprep.subr.bf16.mxu0 %v569
  %801 = vmatpush2.bf16.msra.mxu0 %v568
  %802 = vmatprep.mubr.bf16.mxu0 %v82
  %803 = vmatmul.mubr.bf16.gmra.mxu0 %v81
  %v804 = vpop.f32.mrf.mxu0
  %v805 = vadd.f32 %v764, %v804
  %v806 = vpop.f32.mrf.mxu0
  %v807 = vadd.f32 %v766, %v806
  %v808 = vpop.f32.mrf.mxu0
  %v809 = vpop.f32.mrf.mxu0
  %810 = vdwg.mxu0
  %811 = vmatprep.subr.bf16.mxu0 0
  %812 = vmatpush1.bf16.msra.mxu0 0
  %813 = vmatprep.subr.bf16.mxu0 0
  %814 = vmatpush1.bf16.msra.mxu0 0
  %815 = vmatprep.subr.bf16.mxu0 0
  %816 = vmatpush1.bf16.msra.mxu0 0
  %817 = vmatprep.subr.bf16.mxu0 0
  %818 = vmatpush1.bf16.msra.mxu0 0
  %819 = vmatprep.subr.bf16.mxu0 0
  %820 = vmatpush1.bf16.msra.mxu0 0
  %821 = vmatprep.subr.bf16.mxu0 0
  %822 = vmatpush1.bf16.msra.mxu0 0
  %823 = vmatprep.subr.bf16.mxu0 0
  %824 = vmatpush1.bf16.msra.mxu0 0
  %825 = vmatprep.subr.bf16.mxu0 %v585
  %826 = vmatpush1.bf16.msra.mxu0 %v584
  %827 = vmatprep.subr.bf16.mxu0 0
  %828 = vmatpush2.bf16.msra.mxu0 0
  %829 = vmatprep.subr.bf16.mxu0 0
  %830 = vmatpush2.bf16.msra.mxu0 0
  %831 = vmatprep.subr.bf16.mxu0 0
  %832 = vmatpush2.bf16.msra.mxu0 0
  %833 = vmatprep.subr.bf16.mxu0 0
  %834 = vmatpush2.bf16.msra.mxu0 0
  %835 = vmatprep.subr.bf16.mxu0 0
  %836 = vmatpush2.bf16.msra.mxu0 0
  %837 = vmatprep.subr.bf16.mxu0 0
  %838 = vmatpush2.bf16.msra.mxu0 0
  %839 = vmatprep.subr.bf16.mxu0 0
  %840 = vmatpush2.bf16.msra.mxu0 0
  %841 = vmatprep.subr.bf16.mxu0 0
  %842 = vmatpush2.bf16.msra.mxu0 0
  %843 = vmatprep.mubr.bf16.mxu0 0
  %844 = vmatmul.mubr.bf16.gmra.mxu0 %v686
  %v845 = vpop.f32.mrf.mxu0
  %v846 = vadd.f32 %v805, %v845
  %v847 = vpop.f32.mrf.mxu0
  %v848 = vadd.f32 %v807, %v847
  %v849 = vpop.f32.mrf.mxu0
  %v850 = vpop.f32.mrf.mxu0
  %851 = vdwg.mxu0
  %v852 = vpack.c.bf16 %v846, %v846
  %v853 = vpack.c.bf16 %v848, %v848
  %v854 = vmax.bf16 %v852, 0
  %v855 = vmax.bf16 %v853, 0
  %v856 = vld [vmem:[%s3] sm:$0xf]
  %v857 = vld [vmem:[%s3 + $0x4] sm:$0xf]
  %v858 = vld [vmem:[%s3 + $0x8] sm:$0xf]
  %v859 = vld [vmem:[%s3 + $0xc] sm:$0xf]
  %v860 = vld [vmem:[%s3 + $0x10] sm:$0xf]
  %v861 = vld [vmem:[%s3 + $0x14] sm:$0xf]
  %v862 = vld [vmem:[%s3 + $0x18] sm:$0xf]
  %v863 = vld [vmem:[%s3 + $0x1c] sm:$0xf]
  %v864 = vld [vmem:[%s3 + $0x20] sm:$0xf]
  %v865 = vld [vmem:[%s3 + $0x24] sm:$0xf]
  %v866 = vld [vmem:[%s3 + $0x28] sm:$0xf]
  %v867 = vld [vmem:[%s3 + $0x2c] sm:$0xf]
  %v868 = vld [vmem:[%s3 + $0x30] sm:$0xf]
  %v869 = vld [vmem:[%s3 + $0x34] sm:$0xf]
  %v870 = vld [vmem:[%s3 + $0x38] sm:$0xf]
  %v871 = vld [vmem:[%s3 + $0x3c] sm:$0xf]
  %v872 = vld [vmem:[%s3 + $0x40] sm:$0xf]
  %v873 = vld [vmem:[%s3 + $0x44] sm:$0xf]
  %v874 = vld [vmem:[%s3 + $0x48] sm:$0xf]
  %v875 = vld [vmem:[%s3 + $0x4c] sm:$0xf]
  %v876 = vld [vmem:[%s3 + $0x50] sm:$0xf]
  %v877 = vld [vmem:[%s3 + $0x54] sm:$0xf]
  %v878 = vld [vmem:[%s3 + $0x58] sm:$0xf]
  %v879 = vld [vmem:[%s3 + $0x5c] sm:$0xf]
  %v880 = vld [vmem:[%s3 + $0x60] sm:$0xf]
  %v881 = vld [vmem:[%s3 + $0x64] sm:$0xf]
  %v882 = vld [vmem:[%s3 + $0x68] sm:$0xf]
  %v883 = vld [vmem:[%s3 + $0x6c] sm:$0xf]
  %v884 = vld [vmem:[%s3 + $0x70] sm:$0xf]
  %v885 = vld [vmem:[%s3 + $0x74] sm:$0xf]
  %v886 = vld [vmem:[%s3 + $0x78] sm:$0xf]
  %v887 = vld [vmem:[%s3 + $0x7c] sm:$0xf]
  %v888 = vld [vmem:[%s4] sm:$0x1]
  %v890 = vlaneseq
  %v891 = vshrl.u32 %v890, 7
  %v892 = vsub.s32 0, %v891
  %v893 = vrot.slane %v888, %v892
  %v927 = vunpack.c.l.b16 %v856
  %v928 = vunpack.c.l.b16 %v857
  %v929 = vunpack.c.l.b16 %v858
  %v930 = vunpack.c.l.b16 %v859
  %v931 = vunpack.c.l.b16 %v860
  %v932 = vunpack.c.l.b16 %v861
  %v933 = vunpack.c.l.b16 %v862
  %v934 = vunpack.c.l.b16 %v863
  %v935 = vunpack.c.l.b16 %v864
  %v936 = vunpack.c.l.b16 %v865
  %v937 = vunpack.c.l.b16 %v866
  %v938 = vunpack.c.l.b16 %v867
  %v939 = vunpack.c.l.b16 %v868
  %v940 = vunpack.c.l.b16 %v869
  %v941 = vunpack.c.l.b16 %v870
  %v942 = vunpack.c.l.b16 %v871
  %v943 = vunpack.c.l.b16 %v872
  %v944 = vunpack.c.l.b16 %v873
  %v945 = vunpack.c.l.b16 %v874
  %v946 = vunpack.c.l.b16 %v875
  %v947 = vunpack.c.l.b16 %v876
  %v948 = vunpack.c.l.b16 %v877
  %v949 = vunpack.c.l.b16 %v878
  %v950 = vunpack.c.l.b16 %v879
  %v951 = vunpack.c.l.b16 %v880
  %v952 = vunpack.c.l.b16 %v881
  %v953 = vunpack.c.l.b16 %v882
  %v954 = vunpack.c.l.b16 %v883
  %v955 = vunpack.c.l.b16 %v884
  %v956 = vunpack.c.l.b16 %v885
  %v957 = vunpack.c.l.b16 %v886
  %v958 = vunpack.c.l.b16 %v887
  %v959 = vpack.c.b16 %v928, %v927
  %v960 = vpack.c.b16 %v930, %v929
  %v961 = vpack.c.b16 %v932, %v931
  %v962 = vpack.c.b16 %v934, %v933
  %v963 = vpack.c.b16 %v936, %v935
  %v964 = vpack.c.b16 %v938, %v937
  %v965 = vpack.c.b16 %v940, %v939
  %v966 = vpack.c.b16 %v942, %v941
  %v967 = vpack.c.b16 %v944, %v943
  %v968 = vpack.c.b16 %v946, %v945
  %v969 = vpack.c.b16 %v948, %v947
  %v970 = vpack.c.b16 %v950, %v949
  %v971 = vpack.c.b16 %v952, %v951
  %v972 = vpack.c.b16 %v954, %v953
  %v973 = vpack.c.b16 %v956, %v955
  %v974 = vpack.c.b16 %v958, %v957
  %991 = vmatprep.subr.bf16.mxu0 0
  %992 = vmatpush1.bf16.msra.mxu0 %v966
  %993 = vmatprep.subr.bf16.mxu0 0
  %994 = vmatpush1.bf16.msra.mxu0 %v965
  %995 = vmatprep.subr.bf16.mxu0 0
  %996 = vmatpush1.bf16.msra.mxu0 %v964
  %997 = vmatprep.subr.bf16.mxu0 0
  %998 = vmatpush1.bf16.msra.mxu0 %v963
  %999 = vmatprep.subr.bf16.mxu0 0
  %1000 = vmatpush1.bf16.msra.mxu0 %v962
  %1001 = vmatprep.subr.bf16.mxu0 0
  %1002 = vmatpush1.bf16.msra.mxu0 %v961
  %1003 = vmatprep.subr.bf16.mxu0 0
  %1004 = vmatpush1.bf16.msra.mxu0 %v960
  %1005 = vmatprep.subr.bf16.mxu0 0
  %1006 = vmatpush1.bf16.msra.mxu0 %v959
  %1007 = vmatprep.subr.bf16.mxu0 0
  %1008 = vmatpush2.bf16.msra.mxu0 %v974
  %1009 = vmatprep.subr.bf16.mxu0 0
  %1010 = vmatpush2.bf16.msra.mxu0 %v973
  %1011 = vmatprep.subr.bf16.mxu0 0
  %1012 = vmatpush2.bf16.msra.mxu0 %v972
  %1013 = vmatprep.subr.bf16.mxu0 0
  %1014 = vmatpush2.bf16.msra.mxu0 %v971
  %1015 = vmatprep.subr.bf16.mxu0 0
  %1016 = vmatpush2.bf16.msra.mxu0 %v970
  %1017 = vmatprep.subr.bf16.mxu0 0
  %1018 = vmatpush2.bf16.msra.mxu0 %v969
  %1019 = vmatprep.subr.bf16.mxu0 0
  %1020 = vmatpush2.bf16.msra.mxu0 %v968
  %1021 = vmatprep.subr.bf16.mxu0 0
  %1022 = vmatpush2.bf16.msra.mxu0 %v967
  %1023 = vmatprep.mubr.bf16.mxu0 %v855
  %1024 = vmatmul.mubr.bf16.gmra.mxu0 %v854
  %v1025 = vpop.f32.mrf.mxu0
  %v1026 = vadd.f32 %v893, %v1025
  %v1027 = vpop.f32.mrf.mxu0
  %v1028 = vpop.f32.mrf.mxu0
  %v1029 = vpop.f32.mrf.mxu0
  %1030 = vdwg.mxu0
  %v1031 = vpack.c.bf16 %v1026, %v1026
  %v1032 = vmax.bf16 %v1031, 0
  %v1033 = vld [vmem:[%s5] sm:$0xff]
  %v1034 = vld [vmem:[%s5 + $0x8] sm:$0xff]
  %v1035 = vld [vmem:[%s5 + $0x10] sm:$0xff]
  %v1036 = vld [vmem:[%s5 + $0x18] sm:$0xff]
  %v1037 = vld [vmem:[%s5 + $0x20] sm:$0xff]
  %v1038 = vld [vmem:[%s5 + $0x28] sm:$0xff]
  %v1039 = vld [vmem:[%s5 + $0x30] sm:$0xff]
  %v1040 = vld [vmem:[%s5 + $0x38] sm:$0xff]
  %v1041 = vld [vmem:[%s5 + $0x40] sm:$0xff]
  %v1042 = vld [vmem:[%s5 + $0x48] sm:$0xff]
  %v1043 = vld [vmem:[%s5 + $0x50] sm:$0xff]
  %v1044 = vld [vmem:[%s5 + $0x58] sm:$0xff]
  %v1045 = vld [vmem:[%s5 + $0x60] sm:$0xff]
  %v1046 = vld [vmem:[%s5 + $0x68] sm:$0xff]
  %v1047 = vld [vmem:[%s5 + $0x70] sm:$0xff]
  %v1048 = vld [vmem:[%s5 + $0x78] sm:$0xff]
  %v1049 = vld [vmem:[%s6] sm:$0x3]
  %v1051 = vlaneseq
  %v1052 = vshrl.u32 %v1051, 7
  %v1053 = vsub.s32 0, %v1052
  %v1054 = vrot.slane %v1049, %v1053
  %v1055 = vlaneseq
  %v1056 = vshrl.u32 %v1055, 7
  %v1057 = vsub.s32 1, %v1056
  %v1058 = vrot.slane %v1049, %v1057
  %v1077 = vunpack.c.l.b16 %v1033
  %v1078 = vunpack.c.h.b16 %v1033
  %v1079 = vunpack.c.l.b16 %v1034
  %v1080 = vunpack.c.h.b16 %v1034
  %v1081 = vunpack.c.l.b16 %v1035
  %v1082 = vunpack.c.h.b16 %v1035
  %v1083 = vunpack.c.l.b16 %v1036
  %v1084 = vunpack.c.h.b16 %v1036
  %v1085 = vunpack.c.l.b16 %v1037
  %v1086 = vunpack.c.h.b16 %v1037
  %v1087 = vunpack.c.l.b16 %v1038
  %v1088 = vunpack.c.h.b16 %v1038
  %v1089 = vunpack.c.l.b16 %v1039
  %v1090 = vunpack.c.h.b16 %v1039
  %v1091 = vunpack.c.l.b16 %v1040
  %v1092 = vunpack.c.h.b16 %v1040
  %v1093 = vunpack.c.l.b16 %v1041
  %v1094 = vunpack.c.h.b16 %v1041
  %v1095 = vunpack.c.l.b16 %v1042
  %v1096 = vunpack.c.h.b16 %v1042
  %v1097 = vunpack.c.l.b16 %v1043
  %v1098 = vunpack.c.h.b16 %v1043
  %v1099 = vunpack.c.l.b16 %v1044
  %v1100 = vunpack.c.h.b16 %v1044
  %v1101 = vunpack.c.l.b16 %v1045
  %v1102 = vunpack.c.h.b16 %v1045
  %v1103 = vunpack.c.l.b16 %v1046
  %v1104 = vunpack.c.h.b16 %v1046
  %v1105 = vunpack.c.l.b16 %v1047
  %v1106 = vunpack.c.h.b16 %v1047
  %v1107 = vunpack.c.l.b16 %v1048
  %v1108 = vunpack.c.h.b16 %v1048
  %v1109 = vpack.c.b16 %v1079, %v1077
  %v1110 = vpack.c.b16 %v1080, %v1078
  %v1111 = vpack.c.b16 %v1083, %v1081
  %v1112 = vpack.c.b16 %v1084, %v1082
  %v1113 = vpack.c.b16 %v1087, %v1085
  %v1114 = vpack.c.b16 %v1088, %v1086
  %v1115 = vpack.c.b16 %v1091, %v1089
  %v1116 = vpack.c.b16 %v1092, %v1090
  %v1117 = vpack.c.b16 %v1095, %v1093
  %v1118 = vpack.c.b16 %v1096, %v1094
  %v1119 = vpack.c.b16 %v1099, %v1097
  %v1120 = vpack.c.b16 %v1100, %v1098
  %v1121 = vpack.c.b16 %v1103, %v1101
  %v1122 = vpack.c.b16 %v1104, %v1102
  %v1123 = vpack.c.b16 %v1107, %v1105
  %v1124 = vpack.c.b16 %v1108, %v1106
  %1141 = vmatprep.subr.bf16.mxu0 %v1124
  %1142 = vmatpush1.bf16.msra.mxu0 %v1123
  %1143 = vmatprep.subr.bf16.mxu0 %v1122
  %1144 = vmatpush1.bf16.msra.mxu0 %v1121
  %1145 = vmatprep.subr.bf16.mxu0 %v1120
  %1146 = vmatpush1.bf16.msra.mxu0 %v1119
  %1147 = vmatprep.subr.bf16.mxu0 %v1118
  %1148 = vmatpush1.bf16.msra.mxu0 %v1117
  %1149 = vmatprep.subr.bf16.mxu0 %v1116
  %1150 = vmatpush1.bf16.msra.mxu0 %v1115
  %1151 = vmatprep.subr.bf16.mxu0 %v1114
  %1152 = vmatpush1.bf16.msra.mxu0 %v1113
  %1153 = vmatprep.subr.bf16.mxu0 %v1112
  %1154 = vmatpush1.bf16.msra.mxu0 %v1111
  %1155 = vmatprep.subr.bf16.mxu0 %v1110
  %1156 = vmatpush1.bf16.msra.mxu0 %v1109
  %1157 = vmatprep.subr.bf16.mxu0 0
  %1158 = vmatpush2.bf16.msra.mxu0 0
  %1159 = vmatprep.subr.bf16.mxu0 0
  %1160 = vmatpush2.bf16.msra.mxu0 0
  %1161 = vmatprep.subr.bf16.mxu0 0
  %1162 = vmatpush2.bf16.msra.mxu0 0
  %1163 = vmatprep.subr.bf16.mxu0 0
  %1164 = vmatpush2.bf16.msra.mxu0 0
  %1165 = vmatprep.subr.bf16.mxu0 0
  %1166 = vmatpush2.bf16.msra.mxu0 0
  %1167 = vmatprep.subr.bf16.mxu0 0
  %1168 = vmatpush2.bf16.msra.mxu0 0
  %1169 = vmatprep.subr.bf16.mxu0 0
  %1170 = vmatpush2.bf16.msra.mxu0 0
  %1171 = vmatprep.subr.bf16.mxu0 0
  %1172 = vmatpush2.bf16.msra.mxu0 0
  %1173 = vmatprep.mubr.bf16.mxu0 0
  %1174 = vmatmul.mubr.bf16.gmra.mxu0 %v1032
  %v1175 = vpop.f32.mrf.mxu0
  %v1176 = vadd.f32 %v1054, %v1175
  %v1177 = vpop.f32.mrf.mxu0
  %v1178 = vadd.f32 %v1058, %v1177
  %v1179 = vpop.f32.mrf.mxu0
  %v1180 = vpop.f32.mrf.mxu0
  %1181 = vdwg.mxu0
  %v1182 = vpack.c.bf16 %v1176, %v1176
  %v1183 = vpack.c.bf16 %v1178, %v1178
  %v1184 = vmax.bf16 %v1182, 0
  %v1185 = vmax.bf16 %v1183, 0
  %v1186 = vld [vmem:[%s7] sm:$0xff]
  %v1187 = vld [vmem:[%s7 + $0x8] sm:$0xff]
  %v1188 = vld [vmem:[%s7 + $0x10] sm:$0xff]
  %v1189 = vld [vmem:[%s7 + $0x18] sm:$0xf]
  %v1190 = vld [vmem:[%s7 + $0x1c] sm:$0xff]
  %v1191 = vld [vmem:[%s7 + $0x24] sm:$0xff]
  %v1192 = vld [vmem:[%s7 + $0x2c] sm:$0xff]
  %v1193 = vld [vmem:[%s7 + $0x34] sm:$0xf]
  %v1194 = vld [vmem:[%s7 + $0x38] sm:$0xff]
  %v1195 = vld [vmem:[%s7 + $0x40] sm:$0xff]
  %v1196 = vld [vmem:[%s7 + $0x48] sm:$0xff]
  %v1197 = vld [vmem:[%s7 + $0x50] sm:$0xf]
  %v1198 = vld [vmem:[%s7 + $0x54] sm:$0xff]
  %v1199 = vld [vmem:[%s7 + $0x5c] sm:$0xff]
  %v1200 = vld [vmem:[%s7 + $0x64] sm:$0xff]
  %v1201 = vld [vmem:[%s7 + $0x6c] sm:$0xf]
  %v1202 = vld [vmem:[%s7 + $0x70] sm:$0xff]
  %v1203 = vld [vmem:[%s7 + $0x78] sm:$0xff]
  %v1204 = vld [vmem:[%s7 + $0x80] sm:$0xff]
  %v1205 = vld [vmem:[%s7 + $0x88] sm:$0xf]
  %v1206 = vld [vmem:[%s7 + $0x8c] sm:$0xff]
  %v1207 = vld [vmem:[%s7 + $0x94] sm:$0xff]
  %v1208 = vld [vmem:[%s7 + $0x9c] sm:$0xff]
  %v1209 = vld [vmem:[%s7 + $0xa4] sm:$0xf]
  %v1210 = vld [vmem:[%s7 + $0xa8] sm:$0xff]
  %v1211 = vld [vmem:[%s7 + $0xb0] sm:$0xff]
  %v1212 = vld [vmem:[%s7 + $0xb8] sm:$0xff]
  %v1213 = vld [vmem:[%s7 + $0xc0] sm:$0xf]
  %v1214 = vld [vmem:[%s7 + $0xc4] sm:$0xff]
  %v1215 = vld [vmem:[%s7 + $0xcc] sm:$0xff]
  %v1216 = vld [vmem:[%s7 + $0xd4] sm:$0xff]
  %v1217 = vld [vmem:[%s7 + $0xdc] sm:$0xf]
  %v1218 = vld [vmem:[%s7 + $0xe0] sm:$0xff]
  %v1219 = vld [vmem:[%s7 + $0xe8] sm:$0xff]
  %v1220 = vld [vmem:[%s7 + $0xf0] sm:$0xff]
  %v1221 = vld [vmem:[%s7 + $0xf8] sm:$0xf]
  %v1222 = vld [vmem:[%s7 + $0xfc] sm:$0xff]
  %v1223 = vld [vmem:[%s7 + $0x104] sm:$0xff]
  %v1224 = vld [vmem:[%s7 + $0x10c] sm:$0xff]
  %v1225 = vld [vmem:[%s7 + $0x114] sm:$0xf]
  %v1226 = vld [vmem:[%s7 + $0x118] sm:$0xff]
  %v1227 = vld [vmem:[%s7 + $0x120] sm:$0xff]
  %v1228 = vld [vmem:[%s7 + $0x128] sm:$0xff]
  %v1229 = vld [vmem:[%s7 + $0x130] sm:$0xf]
  %v1230 = vld [vmem:[%s7 + $0x134] sm:$0xff]
  %v1231 = vld [vmem:[%s7 + $0x13c] sm:$0xff]
  %v1232 = vld [vmem:[%s7 + $0x144] sm:$0xff]
  %v1233 = vld [vmem:[%s7 + $0x14c] sm:$0xf]
  %v1234 = vld [vmem:[%s7 + $0x150] sm:$0xff]
  %v1235 = vld [vmem:[%s7 + $0x158] sm:$0xff]
  %v1236 = vld [vmem:[%s7 + $0x160] sm:$0xff]
  %v1237 = vld [vmem:[%s7 + $0x168] sm:$0xf]
  %v1238 = vld [vmem:[%s7 + $0x16c] sm:$0xff]
  %v1239 = vld [vmem:[%s7 + $0x174] sm:$0xff]
  %v1240 = vld [vmem:[%s7 + $0x17c] sm:$0xff]
  %v1241 = vld [vmem:[%s7 + $0x184] sm:$0xf]
  %v1242 = vld [vmem:[%s7 + $0x188] sm:$0xff]
  %v1243 = vld [vmem:[%s7 + $0x190] sm:$0xff]
  %v1244 = vld [vmem:[%s7 + $0x198] sm:$0xff]
  %v1245 = vld [vmem:[%s7 + $0x1a0] sm:$0xf]
  %v1246 = vld [vmem:[%s7 + $0x1a4] sm:$0xff]
  %v1247 = vld [vmem:[%s7 + $0x1ac] sm:$0xff]
  %v1248 = vld [vmem:[%s7 + $0x1b4] sm:$0xff]
  %v1249 = vld [vmem:[%s7 + $0x1bc] sm:$0xf]
  %v1250 = vld [vmem:[%s7 + $0x1c0] sm:$0xff]
  %v1251 = vld [vmem:[%s7 + $0x1c8] sm:$0xff]
  %v1252 = vld [vmem:[%s7 + $0x1d0] sm:$0xff]
  %v1253 = vld [vmem:[%s7 + $0x1d8] sm:$0xf]
  %v1254 = vld [vmem:[%s7 + $0x1dc] sm:$0xff]
  %v1255 = vld [vmem:[%s7 + $0x1e4] sm:$0xff]
  %v1256 = vld [vmem:[%s7 + $0x1ec] sm:$0xff]
  %v1257 = vld [vmem:[%s7 + $0x1f4] sm:$0xf]
  %v1258 = vld [vmem:[%s7 + $0x1f8] sm:$0xff]
  %v1259 = vld [vmem:[%s7 + $0x200] sm:$0xff]
  %v1260 = vld [vmem:[%s7 + $0x208] sm:$0xff]
  %v1261 = vld [vmem:[%s7 + $0x210] sm:$0xf]
  %v1262 = vld [vmem:[%s7 + $0x214] sm:$0xff]
  %v1263 = vld [vmem:[%s7 + $0x21c] sm:$0xff]
  %v1264 = vld [vmem:[%s7 + $0x224] sm:$0xff]
  %v1265 = vld [vmem:[%s7 + $0x22c] sm:$0xf]
  %v1266 = vld [vmem:[%s7 + $0x230] sm:$0xff]
  %v1267 = vld [vmem:[%s7 + $0x238] sm:$0xff]
  %v1268 = vld [vmem:[%s7 + $0x240] sm:$0xff]
  %v1269 = vld [vmem:[%s7 + $0x248] sm:$0xf]
  %v1270 = vld [vmem:[%s7 + $0x24c] sm:$0xff]
  %v1271 = vld [vmem:[%s7 + $0x254] sm:$0xff]
  %v1272 = vld [vmem:[%s7 + $0x25c] sm:$0xff]
  %v1273 = vld [vmem:[%s7 + $0x264] sm:$0xf]
  %v1274 = vld [vmem:[%s7 + $0x268] sm:$0xff]
  %v1275 = vld [vmem:[%s7 + $0x270] sm:$0xff]
  %v1276 = vld [vmem:[%s7 + $0x278] sm:$0xff]
  %v1277 = vld [vmem:[%s7 + $0x280] sm:$0xf]
  %v1278 = vld [vmem:[%s7 + $0x284] sm:$0xff]
  %v1279 = vld [vmem:[%s7 + $0x28c] sm:$0xff]
  %v1280 = vld [vmem:[%s7 + $0x294] sm:$0xff]
  %v1281 = vld [vmem:[%s7 + $0x29c] sm:$0xf]
  %v1282 = vld [vmem:[%s7 + $0x2a0] sm:$0xff]
  %v1283 = vld [vmem:[%s7 + $0x2a8] sm:$0xff]
  %v1284 = vld [vmem:[%s7 + $0x2b0] sm:$0xff]
  %v1285 = vld [vmem:[%s7 + $0x2b8] sm:$0xf]
  %v1286 = vld [vmem:[%s7 + $0x2bc] sm:$0xff]
  %v1287 = vld [vmem:[%s7 + $0x2c4] sm:$0xff]
  %v1288 = vld [vmem:[%s7 + $0x2cc] sm:$0xff]
  %v1289 = vld [vmem:[%s7 + $0x2d4] sm:$0xf]
  %v1290 = vld [vmem:[%s7 + $0x2d8] sm:$0xff]
  %v1291 = vld [vmem:[%s7 + $0x2e0] sm:$0xff]
  %v1292 = vld [vmem:[%s7 + $0x2e8] sm:$0xff]
  %v1293 = vld [vmem:[%s7 + $0x2f0] sm:$0xf]
  %v1294 = vld [vmem:[%s7 + $0x2f4] sm:$0xff]
  %v1295 = vld [vmem:[%s7 + $0x2fc] sm:$0xff]
  %v1296 = vld [vmem:[%s7 + $0x304] sm:$0xff]
  %v1297 = vld [vmem:[%s7 + $0x30c] sm:$0xf]
  %v1298 = vld [vmem:[%s7 + $0x310] sm:$0xff]
  %v1299 = vld [vmem:[%s7 + $0x318] sm:$0xff]
  %v1300 = vld [vmem:[%s7 + $0x320] sm:$0xff]
  %v1301 = vld [vmem:[%s7 + $0x328] sm:$0xf]
  %v1302 = vld [vmem:[%s7 + $0x32c] sm:$0xff]
  %v1303 = vld [vmem:[%s7 + $0x334] sm:$0xff]
  %v1304 = vld [vmem:[%s7 + $0x33c] sm:$0xff]
  %v1305 = vld [vmem:[%s7 + $0x344] sm:$0xf]
  %v1306 = vld [vmem:[%s7 + $0x348] sm:$0xff]
  %v1307 = vld [vmem:[%s7 + $0x350] sm:$0xff]
  %v1308 = vld [vmem:[%s7 + $0x358] sm:$0xff]
  %v1309 = vld [vmem:[%s7 + $0x360] sm:$0xf]
  %v1310 = vld [vmem:[%s7 + $0x364] sm:$0xff]
  %v1311 = vld [vmem:[%s7 + $0x36c] sm:$0xff]
  %v1312 = vld [vmem:[%s7 + $0x374] sm:$0xff]
  %v1313 = vld [vmem:[%s7 + $0x37c] sm:$0xf]
  %v1314 = vld [vmem:[%s8] sm:$0x7f]
  %v1316 = vlaneseq
  %v1317 = vshrl.u32 %v1316, 7
  %v1318 = vsub.s32 0, %v1317
  %v1319 = vrot.slane %v1314, %v1318
  %v1320 = vlaneseq
  %v1321 = vshrl.u32 %v1320, 7
  %v1322 = vsub.s32 1, %v1321
  %v1323 = vrot.slane %v1314, %v1322
  %v1324 = vlaneseq
  %v1325 = vshrl.u32 %v1324, 7
  %v1326 = vsub.s32 2, %v1325
  %v1327 = vrot.slane %v1314, %v1326
  %v1328 = vlaneseq
  %v1329 = vshrl.u32 %v1328, 7
  %v1330 = vsub.s32 3, %v1329
  %v1331 = vrot.slane %v1314, %v1330
  %v1332 = vlaneseq
  %v1333 = vshrl.u32 %v1332, 7
  %v1334 = vsub.s32 4, %v1333
  %v1335 = vrot.slane %v1314, %v1334
  %v1336 = vlaneseq
  %v1337 = vshrl.u32 %v1336, 7
  %v1338 = vsub.s32 5, %v1337
  %v1339 = vrot.slane %v1314, %v1338
  %v1340 = vlaneseq
  %v1341 = vshrl.u32 %v1340, 7
  %v1342 = vsub.s32 6, %v1341
  %v1343 = vrot.slane %v1314, %v1342
  %v1479 = vunpack.c.l.b16 %v1186
  %v1480 = vunpack.c.h.b16 %v1186
  %v1481 = vunpack.c.l.b16 %v1187
  %v1482 = vunpack.c.h.b16 %v1187
  %v1483 = vunpack.c.l.b16 %v1188
  %v1484 = vunpack.c.h.b16 %v1188
  %v1485 = vunpack.c.l.b16 %v1189
  %v1486 = vunpack.c.l.b16 %v1190
  %v1487 = vunpack.c.h.b16 %v1190
  %v1488 = vunpack.c.l.b16 %v1191
  %v1489 = vunpack.c.h.b16 %v1191
  %v1490 = vunpack.c.l.b16 %v1192
  %v1491 = vunpack.c.h.b16 %v1192
  %v1492 = vunpack.c.l.b16 %v1193
  %v1493 = vunpack.c.l.b16 %v1194
  %v1494 = vunpack.c.h.b16 %v1194
  %v1495 = vunpack.c.l.b16 %v1195
  %v1496 = vunpack.c.h.b16 %v1195
  %v1497 = vunpack.c.l.b16 %v1196
  %v1498 = vunpack.c.h.b16 %v1196
  %v1499 = vunpack.c.l.b16 %v1197
  %v1500 = vunpack.c.l.b16 %v1198
  %v1501 = vunpack.c.h.b16 %v1198
  %v1502 = vunpack.c.l.b16 %v1199
  %v1503 = vunpack.c.h.b16 %v1199
  %v1504 = vunpack.c.l.b16 %v1200
  %v1505 = vunpack.c.h.b16 %v1200
  %v1506 = vunpack.c.l.b16 %v1201
  %v1507 = vunpack.c.l.b16 %v1202
  %v1508 = vunpack.c.h.b16 %v1202
  %v1509 = vunpack.c.l.b16 %v1203
  %v1510 = vunpack.c.h.b16 %v1203
  %v1511 = vunpack.c.l.b16 %v1204
  %v1512 = vunpack.c.h.b16 %v1204
  %v1513 = vunpack.c.l.b16 %v1205
  %v1514 = vunpack.c.l.b16 %v1206
  %v1515 = vunpack.c.h.b16 %v1206
  %v1516 = vunpack.c.l.b16 %v1207
  %v1517 = vunpack.c.h.b16 %v1207
  %v1518 = vunpack.c.l.b16 %v1208
  %v1519 = vunpack.c.h.b16 %v1208
  %v1520 = vunpack.c.l.b16 %v1209
  %v1521 = vunpack.c.l.b16 %v1210
  %v1522 = vunpack.c.h.b16 %v1210
  %v1523 = vunpack.c.l.b16 %v1211
  %v1524 = vunpack.c.h.b16 %v1211
  %v1525 = vunpack.c.l.b16 %v1212
  %v1526 = vunpack.c.h.b16 %v1212
  %v1527 = vunpack.c.l.b16 %v1213
  %v1528 = vunpack.c.l.b16 %v1214
  %v1529 = vunpack.c.h.b16 %v1214
  %v1530 = vunpack.c.l.b16 %v1215
  %v1531 = vunpack.c.h.b16 %v1215
  %v1532 = vunpack.c.l.b16 %v1216
  %v1533 = vunpack.c.h.b16 %v1216
  %v1534 = vunpack.c.l.b16 %v1217
  %v1535 = vunpack.c.l.b16 %v1218
  %v1536 = vunpack.c.h.b16 %v1218
  %v1537 = vunpack.c.l.b16 %v1219
  %v1538 = vunpack.c.h.b16 %v1219
  %v1539 = vunpack.c.l.b16 %v1220
  %v1540 = vunpack.c.h.b16 %v1220
  %v1541 = vunpack.c.l.b16 %v1221
  %v1542 = vunpack.c.l.b16 %v1222
  %v1543 = vunpack.c.h.b16 %v1222
  %v1544 = vunpack.c.l.b16 %v1223
  %v1545 = vunpack.c.h.b16 %v1223
  %v1546 = vunpack.c.l.b16 %v1224
  %v1547 = vunpack.c.h.b16 %v1224
  %v1548 = vunpack.c.l.b16 %v1225
  %v1549 = vunpack.c.l.b16 %v1226
  %v1550 = vunpack.c.h.b16 %v1226
  %v1551 = vunpack.c.l.b16 %v1227
  %v1552 = vunpack.c.h.b16 %v1227
  %v1553 = vunpack.c.l.b16 %v1228
  %v1554 = vunpack.c.h.b16 %v1228
  %v1555 = vunpack.c.l.b16 %v1229
  %v1556 = vunpack.c.l.b16 %v1230
  %v1557 = vunpack.c.h.b16 %v1230
  %v1558 = vunpack.c.l.b16 %v1231
  %v1559 = vunpack.c.h.b16 %v1231
  %v1560 = vunpack.c.l.b16 %v1232
  %v1561 = vunpack.c.h.b16 %v1232
  %v1562 = vunpack.c.l.b16 %v1233
  %v1563 = vunpack.c.l.b16 %v1234
  %v1564 = vunpack.c.h.b16 %v1234
  %v1565 = vunpack.c.l.b16 %v1235
  %v1566 = vunpack.c.h.b16 %v1235
  %v1567 = vunpack.c.l.b16 %v1236
  %v1568 = vunpack.c.h.b16 %v1236
  %v1569 = vunpack.c.l.b16 %v1237
  %v1570 = vunpack.c.l.b16 %v1238
  %v1571 = vunpack.c.h.b16 %v1238
  %v1572 = vunpack.c.l.b16 %v1239
  %v1573 = vunpack.c.h.b16 %v1239
  %v1574 = vunpack.c.l.b16 %v1240
  %v1575 = vunpack.c.h.b16 %v1240
  %v1576 = vunpack.c.l.b16 %v1241
  %v1577 = vunpack.c.l.b16 %v1242
  %v1578 = vunpack.c.h.b16 %v1242
  %v1579 = vunpack.c.l.b16 %v1243
  %v1580 = vunpack.c.h.b16 %v1243
  %v1581 = vunpack.c.l.b16 %v1244
  %v1582 = vunpack.c.h.b16 %v1244
  %v1583 = vunpack.c.l.b16 %v1245
  %v1584 = vunpack.c.l.b16 %v1246
  %v1585 = vunpack.c.h.b16 %v1246
  %v1586 = vunpack.c.l.b16 %v1247
  %v1587 = vunpack.c.h.b16 %v1247
  %v1588 = vunpack.c.l.b16 %v1248
  %v1589 = vunpack.c.h.b16 %v1248
  %v1590 = vunpack.c.l.b16 %v1249
  %v1591 = vunpack.c.l.b16 %v1250
  %v1592 = vunpack.c.h.b16 %v1250
  %v1593 = vunpack.c.l.b16 %v1251
  %v1594 = vunpack.c.h.b16 %v1251
  %v1595 = vunpack.c.l.b16 %v1252
  %v1596 = vunpack.c.h.b16 %v1252
  %v1597 = vunpack.c.l.b16 %v1253
  %v1598 = vunpack.c.l.b16 %v1254
  %v1599 = vunpack.c.h.b16 %v1254
  %v1600 = vunpack.c.l.b16 %v1255
  %v1601 = vunpack.c.h.b16 %v1255
  %v1602 = vunpack.c.l.b16 %v1256
  %v1603 = vunpack.c.h.b16 %v1256
  %v1604 = vunpack.c.l.b16 %v1257
  %v1605 = vunpack.c.l.b16 %v1258
  %v1606 = vunpack.c.h.b16 %v1258
  %v1607 = vunpack.c.l.b16 %v1259
  %v1608 = vunpack.c.h.b16 %v1259
  %v1609 = vunpack.c.l.b16 %v1260
  %v1610 = vunpack.c.h.b16 %v1260
  %v1611 = vunpack.c.l.b16 %v1261
  %v1612 = vunpack.c.l.b16 %v1262
  %v1613 = vunpack.c.h.b16 %v1262
  %v1614 = vunpack.c.l.b16 %v1263
  %v1615 = vunpack.c.h.b16 %v1263
  %v1616 = vunpack.c.l.b16 %v1264
  %v1617 = vunpack.c.h.b16 %v1264
  %v1618 = vunpack.c.l.b16 %v1265
  %v1619 = vunpack.c.l.b16 %v1266
  %v1620 = vunpack.c.h.b16 %v1266
  %v1621 = vunpack.c.l.b16 %v1267
  %v1622 = vunpack.c.h.b16 %v1267
  %v1623 = vunpack.c.l.b16 %v1268
  %v1624 = vunpack.c.h.b16 %v1268
  %v1625 = vunpack.c.l.b16 %v1269
  %v1626 = vunpack.c.l.b16 %v1270
  %v1627 = vunpack.c.h.b16 %v1270
  %v1628 = vunpack.c.l.b16 %v1271
  %v1629 = vunpack.c.h.b16 %v1271
  %v1630 = vunpack.c.l.b16 %v1272
  %v1631 = vunpack.c.h.b16 %v1272
  %v1632 = vunpack.c.l.b16 %v1273
  %v1633 = vunpack.c.l.b16 %v1274
  %v1634 = vunpack.c.h.b16 %v1274
  %v1635 = vunpack.c.l.b16 %v1275
  %v1636 = vunpack.c.h.b16 %v1275
  %v1637 = vunpack.c.l.b16 %v1276
  %v1638 = vunpack.c.h.b16 %v1276
  %v1639 = vunpack.c.l.b16 %v1277
  %v1640 = vunpack.c.l.b16 %v1278
  %v1641 = vunpack.c.h.b16 %v1278
  %v1642 = vunpack.c.l.b16 %v1279
  %v1643 = vunpack.c.h.b16 %v1279
  %v1644 = vunpack.c.l.b16 %v1280
  %v1645 = vunpack.c.h.b16 %v1280
  %v1646 = vunpack.c.l.b16 %v1281
  %v1647 = vunpack.c.l.b16 %v1282
  %v1648 = vunpack.c.h.b16 %v1282
  %v1649 = vunpack.c.l.b16 %v1283
  %v1650 = vunpack.c.h.b16 %v1283
  %v1651 = vunpack.c.l.b16 %v1284
  %v1652 = vunpack.c.h.b16 %v1284
  %v1653 = vunpack.c.l.b16 %v1285
  %v1654 = vunpack.c.l.b16 %v1286
  %v1655 = vunpack.c.h.b16 %v1286
  %v1656 = vunpack.c.l.b16 %v1287
  %v1657 = vunpack.c.h.b16 %v1287
  %v1658 = vunpack.c.l.b16 %v1288
  %v1659 = vunpack.c.h.b16 %v1288
  %v1660 = vunpack.c.l.b16 %v1289
  %v1661 = vunpack.c.l.b16 %v1290
  %v1662 = vunpack.c.h.b16 %v1290
  %v1663 = vunpack.c.l.b16 %v1291
  %v1664 = vunpack.c.h.b16 %v1291
  %v1665 = vunpack.c.l.b16 %v1292
  %v1666 = vunpack.c.h.b16 %v1292
  %v1667 = vunpack.c.l.b16 %v1293
  %v1668 = vunpack.c.l.b16 %v1294
  %v1669 = vunpack.c.h.b16 %v1294
  %v1670 = vunpack.c.l.b16 %v1295
  %v1671 = vunpack.c.h.b16 %v1295
  %v1672 = vunpack.c.l.b16 %v1296
  %v1673 = vunpack.c.h.b16 %v1296
  %v1674 = vunpack.c.l.b16 %v1297
  %v1675 = vunpack.c.l.b16 %v1298
  %v1676 = vunpack.c.h.b16 %v1298
  %v1677 = vunpack.c.l.b16 %v1299
  %v1678 = vunpack.c.h.b16 %v1299
  %v1679 = vunpack.c.l.b16 %v1300
  %v1680 = vunpack.c.h.b16 %v1300
  %v1681 = vunpack.c.l.b16 %v1301
  %v1682 = vunpack.c.l.b16 %v1302
  %v1683 = vunpack.c.h.b16 %v1302
  %v1684 = vunpack.c.l.b16 %v1303
  %v1685 = vunpack.c.h.b16 %v1303
  %v1686 = vunpack.c.l.b16 %v1304
  %v1687 = vunpack.c.h.b16 %v1304
  %v1688 = vunpack.c.l.b16 %v1305
  %v1689 = vunpack.c.l.b16 %v1306
  %v1690 = vunpack.c.h.b16 %v1306
  %v1691 = vunpack.c.l.b16 %v1307
  %v1692 = vunpack.c.h.b16 %v1307
  %v1693 = vunpack.c.l.b16 %v1308
  %v1694 = vunpack.c.h.b16 %v1308
  %v1695 = vunpack.c.l.b16 %v1309
  %v1696 = vunpack.c.l.b16 %v1310
  %v1697 = vunpack.c.h.b16 %v1310
  %v1698 = vunpack.c.l.b16 %v1311
  %v1699 = vunpack.c.h.b16 %v1311
  %v1700 = vunpack.c.l.b16 %v1312
  %v1701 = vunpack.c.h.b16 %v1312
  %v1702 = vunpack.c.l.b16 %v1313
  %v1703 = vpack.c.b16 %v1486, %v1479
  %v1704 = vpack.c.b16 %v1487, %v1480
  %v1705 = vpack.c.b16 %v1488, %v1481
  %v1706 = vpack.c.b16 %v1489, %v1482
  %v1707 = vpack.c.b16 %v1490, %v1483
  %v1708 = vpack.c.b16 %v1491, %v1484
  %v1709 = vpack.c.b16 %v1492, %v1485
  %v1710 = vpack.c.b16 %v1500, %v1493
  %v1711 = vpack.c.b16 %v1501, %v1494
  %v1712 = vpack.c.b16 %v1502, %v1495
  %v1713 = vpack.c.b16 %v1503, %v1496
  %v1714 = vpack.c.b16 %v1504, %v1497
  %v1715 = vpack.c.b16 %v1505, %v1498
  %v1716 = vpack.c.b16 %v1506, %v1499
  %v1717 = vpack.c.b16 %v1514, %v1507
  %v1718 = vpack.c.b16 %v1515, %v1508
  %v1719 = vpack.c.b16 %v1516, %v1509
  %v1720 = vpack.c.b16 %v1517, %v1510
  %v1721 = vpack.c.b16 %v1518, %v1511
  %v1722 = vpack.c.b16 %v1519, %v1512
  %v1723 = vpack.c.b16 %v1520, %v1513
  %v1724 = vpack.c.b16 %v1528, %v1521
  %v1725 = vpack.c.b16 %v1529, %v1522
  %v1726 = vpack.c.b16 %v1530, %v1523
  %v1727 = vpack.c.b16 %v1531, %v1524
  %v1728 = vpack.c.b16 %v1532, %v1525
  %v1729 = vpack.c.b16 %v1533, %v1526
  %v1730 = vpack.c.b16 %v1534, %v1527
  %v1731 = vpack.c.b16 %v1542, %v1535
  %v1732 = vpack.c.b16 %v1543, %v1536
  %v1733 = vpack.c.b16 %v1544, %v1537
  %v1734 = vpack.c.b16 %v1545, %v1538
  %v1735 = vpack.c.b16 %v1546, %v1539
  %v1736 = vpack.c.b16 %v1547, %v1540
  %v1737 = vpack.c.b16 %v1548, %v1541
  %v1738 = vpack.c.b16 %v1556, %v1549
  %v1739 = vpack.c.b16 %v1557, %v1550
  %v1740 = vpack.c.b16 %v1558, %v1551
  %v1741 = vpack.c.b16 %v1559, %v1552
  %v1742 = vpack.c.b16 %v1560, %v1553
  %v1743 = vpack.c.b16 %v1561, %v1554
  %v1744 = vpack.c.b16 %v1562, %v1555
  %v1745 = vpack.c.b16 %v1570, %v1563
  %v1746 = vpack.c.b16 %v1571, %v1564
  %v1747 = vpack.c.b16 %v1572, %v1565
  %v1748 = vpack.c.b16 %v1573, %v1566
  %v1749 = vpack.c.b16 %v1574, %v1567
  %v1750 = vpack.c.b16 %v1575, %v1568
  %v1751 = vpack.c.b16 %v1576, %v1569
  %v1752 = vpack.c.b16 %v1584, %v1577
  %v1753 = vpack.c.b16 %v1585, %v1578
  %v1754 = vpack.c.b16 %v1586, %v1579
  %v1755 = vpack.c.b16 %v1587, %v1580
  %v1756 = vpack.c.b16 %v1588, %v1581
  %v1757 = vpack.c.b16 %v1589, %v1582
  %v1758 = vpack.c.b16 %v1590, %v1583
  %v1759 = vpack.c.b16 %v1598, %v1591
  %v1760 = vpack.c.b16 %v1599, %v1592
  %v1761 = vpack.c.b16 %v1600, %v1593
  %v1762 = vpack.c.b16 %v1601, %v1594
  %v1763 = vpack.c.b16 %v1602, %v1595
  %v1764 = vpack.c.b16 %v1603, %v1596
  %v1765 = vpack.c.b16 %v1604, %v1597
  %v1766 = vpack.c.b16 %v1612, %v1605
  %v1767 = vpack.c.b16 %v1613, %v1606
  %v1768 = vpack.c.b16 %v1614, %v1607
  %v1769 = vpack.c.b16 %v1615, %v1608
  %v1770 = vpack.c.b16 %v1616, %v1609
  %v1771 = vpack.c.b16 %v1617, %v1610
  %v1772 = vpack.c.b16 %v1618, %v1611
  %v1773 = vpack.c.b16 %v1626, %v1619
  %v1774 = vpack.c.b16 %v1627, %v1620
  %v1775 = vpack.c.b16 %v1628, %v1621
  %v1776 = vpack.c.b16 %v1629, %v1622
  %v1777 = vpack.c.b16 %v1630, %v1623
  %v1778 = vpack.c.b16 %v1631, %v1624
  %v1779 = vpack.c.b16 %v1632, %v1625
  %v1780 = vpack.c.b16 %v1640, %v1633
  %v1781 = vpack.c.b16 %v1641, %v1634
  %v1782 = vpack.c.b16 %v1642, %v1635
  %v1783 = vpack.c.b16 %v1643, %v1636
  %v1784 = vpack.c.b16 %v1644, %v1637
  %v1785 = vpack.c.b16 %v1645, %v1638
  %v1786 = vpack.c.b16 %v1646, %v1639
  %v1787 = vpack.c.b16 %v1654, %v1647
  %v1788 = vpack.c.b16 %v1655, %v1648
  %v1789 = vpack.c.b16 %v1656, %v1649
  %v1790 = vpack.c.b16 %v1657, %v1650
  %v1791 = vpack.c.b16 %v1658, %v1651
  %v1792 = vpack.c.b16 %v1659, %v1652
  %v1793 = vpack.c.b16 %v1660, %v1653
  %v1794 = vpack.c.b16 %v1668, %v1661
  %v1795 = vpack.c.b16 %v1669, %v1662
  %v1796 = vpack.c.b16 %v1670, %v1663
  %v1797 = vpack.c.b16 %v1671, %v1664
  %v1798 = vpack.c.b16 %v1672, %v1665
  %v1799 = vpack.c.b16 %v1673, %v1666
  %v1800 = vpack.c.b16 %v1674, %v1667
  %v1801 = vpack.c.b16 %v1682, %v1675
  %v1802 = vpack.c.b16 %v1683, %v1676
  %v1803 = vpack.c.b16 %v1684, %v1677
  %v1804 = vpack.c.b16 %v1685, %v1678
  %v1805 = vpack.c.b16 %v1686, %v1679
  %v1806 = vpack.c.b16 %v1687, %v1680
  %v1807 = vpack.c.b16 %v1688, %v1681
  %v1808 = vpack.c.b16 %v1696, %v1689
  %v1809 = vpack.c.b16 %v1697, %v1690
  %v1810 = vpack.c.b16 %v1698, %v1691
  %v1811 = vpack.c.b16 %v1699, %v1692
  %v1812 = vpack.c.b16 %v1700, %v1693
  %v1813 = vpack.c.b16 %v1701, %v1694
  %v1814 = vpack.c.b16 %v1702, %v1695
  %1927 = vmatprep.subr.bf16.mxu0 %v1753
  %1928 = vmatpush1.bf16.msra.mxu0 %v1752
  %1929 = vmatprep.subr.bf16.mxu0 %v1746
  %1930 = vmatpush1.bf16.msra.mxu0 %v1745
  %1931 = vmatprep.subr.bf16.mxu0 %v1739
  %1932 = vmatpush1.bf16.msra.mxu0 %v1738
  %1933 = vmatprep.subr.bf16.mxu0 %v1732
  %1934 = vmatpush1.bf16.msra.mxu0 %v1731
  %1935 = vmatprep.subr.bf16.mxu0 %v1725
  %1936 = vmatpush1.bf16.msra.mxu0 %v1724
  %1937 = vmatprep.subr.bf16.mxu0 %v1718
  %1938 = vmatpush1.bf16.msra.mxu0 %v1717
  %1939 = vmatprep.subr.bf16.mxu0 %v1711
  %1940 = vmatpush1.bf16.msra.mxu0 %v1710
  %1941 = vmatprep.subr.bf16.mxu0 %v1704
  %1942 = vmatpush1.bf16.msra.mxu0 %v1703
  %1943 = vmatprep.subr.bf16.mxu0 %v1809
  %1944 = vmatpush2.bf16.msra.mxu0 %v1808
  %1945 = vmatprep.subr.bf16.mxu0 %v1802
  %1946 = vmatpush2.bf16.msra.mxu0 %v1801
  %1947 = vmatprep.subr.bf16.mxu0 %v1795
  %1948 = vmatpush2.bf16.msra.mxu0 %v1794
  %1949 = vmatprep.subr.bf16.mxu0 %v1788
  %1950 = vmatpush2.bf16.msra.mxu0 %v1787
  %1951 = vmatprep.subr.bf16.mxu0 %v1781
  %1952 = vmatpush2.bf16.msra.mxu0 %v1780
  %1953 = vmatprep.subr.bf16.mxu0 %v1774
  %1954 = vmatpush2.bf16.msra.mxu0 %v1773
  %1955 = vmatprep.subr.bf16.mxu0 %v1767
  %1956 = vmatpush2.bf16.msra.mxu0 %v1766
  %1957 = vmatprep.subr.bf16.mxu0 %v1760
  %1958 = vmatpush2.bf16.msra.mxu0 %v1759
  %1959 = vmatprep.mubr.bf16.mxu0 %v1185
  %1960 = vmatmul.mubr.bf16.gmra.mxu0 %v1184
  %v1961 = vpop.f32.mrf.mxu0
  %v1962 = vadd.f32 %v1319, %v1961
  %v1963 = vpop.f32.mrf.mxu0
  %v1964 = vadd.f32 %v1323, %v1963
  %v1965 = vpop.f32.mrf.mxu0
  %v1966 = vpop.f32.mrf.mxu0
  %1967 = vdwg.mxu0
  %1968 = vmatprep.subr.bf16.mxu0 %v1755
  %1969 = vmatpush1.bf16.msra.mxu0 %v1754
  %1970 = vmatprep.subr.bf16.mxu0 %v1748
  %1971 = vmatpush1.bf16.msra.mxu0 %v1747
  %1972 = vmatprep.subr.bf16.mxu0 %v1741
  %1973 = vmatpush1.bf16.msra.mxu0 %v1740
  %1974 = vmatprep.subr.bf16.mxu0 %v1734
  %1975 = vmatpush1.bf16.msra.mxu0 %v1733
  %1976 = vmatprep.subr.bf16.mxu0 %v1727
  %1977 = vmatpush1.bf16.msra.mxu0 %v1726
  %1978 = vmatprep.subr.bf16.mxu0 %v1720
  %1979 = vmatpush1.bf16.msra.mxu0 %v1719
  %1980 = vmatprep.subr.bf16.mxu0 %v1713
  %1981 = vmatpush1.bf16.msra.mxu0 %v1712
  %1982 = vmatprep.subr.bf16.mxu0 %v1706
  %1983 = vmatpush1.bf16.msra.mxu0 %v1705
  %1984 = vmatprep.subr.bf16.mxu0 %v1811
  %1985 = vmatpush2.bf16.msra.mxu0 %v1810
  %1986 = vmatprep.subr.bf16.mxu0 %v1804
  %1987 = vmatpush2.bf16.msra.mxu0 %v1803
  %1988 = vmatprep.subr.bf16.mxu0 %v1797
  %1989 = vmatpush2.bf16.msra.mxu0 %v1796
  %1990 = vmatprep.subr.bf16.mxu0 %v1790
  %1991 = vmatpush2.bf16.msra.mxu0 %v1789
  %1992 = vmatprep.subr.bf16.mxu0 %v1783
  %1993 = vmatpush2.bf16.msra.mxu0 %v1782
  %1994 = vmatprep.subr.bf16.mxu0 %v1776
  %1995 = vmatpush2.bf16.msra.mxu0 %v1775
  %1996 = vmatprep.subr.bf16.mxu0 %v1769
  %1997 = vmatpush2.bf16.msra.mxu0 %v1768
  %1998 = vmatprep.subr.bf16.mxu0 %v1762
  %1999 = vmatpush2.bf16.msra.mxu0 %v1761
  %2000 = vmatprep.mubr.bf16.mxu0 %v1185
  %2001 = vmatmul.mubr.bf16.gmra.mxu0 %v1184
  %v2002 = vpop.f32.mrf.mxu0
  %v2003 = vadd.f32 %v1327, %v2002
  %v2004 = vpop.f32.mrf.mxu0
  %v2005 = vadd.f32 %v1331, %v2004
  %v2006 = vpop.f32.mrf.mxu0
  %v2007 = vpop.f32.mrf.mxu0
  %2008 = vdwg.mxu0
  %2009 = vmatprep.subr.bf16.mxu0 %v1757
  %2010 = vmatpush1.bf16.msra.mxu0 %v1756
  %2011 = vmatprep.subr.bf16.mxu0 %v1750
  %2012 = vmatpush1.bf16.msra.mxu0 %v1749
  %2013 = vmatprep.subr.bf16.mxu0 %v1743
  %2014 = vmatpush1.bf16.msra.mxu0 %v1742
  %2015 = vmatprep.subr.bf16.mxu0 %v1736
  %2016 = vmatpush1.bf16.msra.mxu0 %v1735
  %2017 = vmatprep.subr.bf16.mxu0 %v1729
  %2018 = vmatpush1.bf16.msra.mxu0 %v1728
  %2019 = vmatprep.subr.bf16.mxu0 %v1722
  %2020 = vmatpush1.bf16.msra.mxu0 %v1721
  %2021 = vmatprep.subr.bf16.mxu0 %v1715
  %2022 = vmatpush1.bf16.msra.mxu0 %v1714
  %2023 = vmatprep.subr.bf16.mxu0 %v1708
  %2024 = vmatpush1.bf16.msra.mxu0 %v1707
  %2025 = vmatprep.subr.bf16.mxu0 %v1813
  %2026 = vmatpush2.bf16.msra.mxu0 %v1812
  %2027 = vmatprep.subr.bf16.mxu0 %v1806
  %2028 = vmatpush2.bf16.msra.mxu0 %v1805
  %2029 = vmatprep.subr.bf16.mxu0 %v1799
  %2030 = vmatpush2.bf16.msra.mxu0 %v1798
  %2031 = vmatprep.subr.bf16.mxu0 %v1792
  %2032 = vmatpush2.bf16.msra.mxu0 %v1791
  %2033 = vmatprep.subr.bf16.mxu0 %v1785
  %2034 = vmatpush2.bf16.msra.mxu0 %v1784
  %2035 = vmatprep.subr.bf16.mxu0 %v1778
  %2036 = vmatpush2.bf16.msra.mxu0 %v1777
  %2037 = vmatprep.subr.bf16.mxu0 %v1771
  %2038 = vmatpush2.bf16.msra.mxu0 %v1770
  %2039 = vmatprep.subr.bf16.mxu0 %v1764
  %2040 = vmatpush2.bf16.msra.mxu0 %v1763
  %2041 = vmatprep.mubr.bf16.mxu0 %v1185
  %2042 = vmatmul.mubr.bf16.gmra.mxu0 %v1184
  %v2043 = vpop.f32.mrf.mxu0
  %v2044 = vadd.f32 %v1335, %v2043
  %v2045 = vpop.f32.mrf.mxu0
  %v2046 = vadd.f32 %v1339, %v2045
  %v2047 = vpop.f32.mrf.mxu0
  %v2048 = vpop.f32.mrf.mxu0
  %2049 = vdwg.mxu0
  %2050 = vmatprep.subr.bf16.mxu0 0
  %2051 = vmatpush1.bf16.msra.mxu0 %v1758
  %2052 = vmatprep.subr.bf16.mxu0 0
  %2053 = vmatpush1.bf16.msra.mxu0 %v1751
  %2054 = vmatprep.subr.bf16.mxu0 0
  %2055 = vmatpush1.bf16.msra.mxu0 %v1744
  %2056 = vmatprep.subr.bf16.mxu0 0
  %2057 = vmatpush1.bf16.msra.mxu0 %v1737
  %2058 = vmatprep.subr.bf16.mxu0 0
  %2059 = vmatpush1.bf16.msra.mxu0 %v1730
  %2060 = vmatprep.subr.bf16.mxu0 0
  %2061 = vmatpush1.bf16.msra.mxu0 %v1723
  %2062 = vmatprep.subr.bf16.mxu0 0
  %2063 = vmatpush1.bf16.msra.mxu0 %v1716
  %2064 = vmatprep.subr.bf16.mxu0 0
  %2065 = vmatpush1.bf16.msra.mxu0 %v1709
  %2066 = vmatprep.subr.bf16.mxu0 0
  %2067 = vmatpush2.bf16.msra.mxu0 %v1814
  %2068 = vmatprep.subr.bf16.mxu0 0
  %2069 = vmatpush2.bf16.msra.mxu0 %v1807
  %2070 = vmatprep.subr.bf16.mxu0 0
  %2071 = vmatpush2.bf16.msra.mxu0 %v1800
  %2072 = vmatprep.subr.bf16.mxu0 0
  %2073 = vmatpush2.bf16.msra.mxu0 %v1793
  %2074 = vmatprep.subr.bf16.mxu0 0
  %2075 = vmatpush2.bf16.msra.mxu0 %v1786
  %2076 = vmatprep.subr.bf16.mxu0 0
  %2077 = vmatpush2.bf16.msra.mxu0 %v1779
  %2078 = vmatprep.subr.bf16.mxu0 0
  %2079 = vmatpush2.bf16.msra.mxu0 %v1772
  %2080 = vmatprep.subr.bf16.mxu0 0
  %2081 = vmatpush2.bf16.msra.mxu0 %v1765
  %2082 = vmatprep.mubr.bf16.mxu0 %v1185
  %2083 = vmatmul.mubr.bf16.gmra.mxu0 %v1184
  %v2084 = vpop.f32.mrf.mxu0
  %v2085 = vadd.f32 %v1343, %v2084
  %v2086 = vpop.f32.mrf.mxu0
  %v2087 = vpop.f32.mrf.mxu0
  %v2088 = vpop.f32.mrf.mxu0
  %2089 = vdwg.mxu0
  %v2090 = vmul.f32 %v1962, 0.5
  %v2091 = vmul.f32 %v1964, 0.5
  %v2092 = vmul.f32 %v2003, 0.5
  %v2093 = vmul.f32 %v2005, 0.5
  %v2094 = vmul.f32 %v2044, 0.5
  %v2095 = vmul.f32 %v2046, 0.5
  %v2096 = vmul.f32 %v2085, 0.5
  %v2097 = vtanh.pop %v2090
  %v2098 = vtanh.pop %v2091
  %v2099 = vtanh.pop %v2092
  %v2100 = vtanh.pop %v2093
  %v2101 = vtanh.pop %v2094
  %v2102 = vtanh.pop %v2095
  %v2103 = vtanh.pop %v2096
  %v2104 = vmul.f32 %v2097, 0.5
  %v2105 = vmul.f32 %v2098, 0.5
  %v2106 = vmul.f32 %v2099, 0.5
  %v2107 = vmul.f32 %v2100, 0.5
  %v2108 = vmul.f32 %v2101, 0.5
  %v2109 = vmul.f32 %v2102, 0.5
  %v2110 = vmul.f32 %v2103, 0.5
  %v2111 = vadd.f32 %v2104, 0.5
  %v2112 = vadd.f32 %v2105, 0.5
  %v2113 = vadd.f32 %v2106, 0.5
  %v2114 = vadd.f32 %v2107, 0.5
  %v2115 = vadd.f32 %v2108, 0.5
  %v2116 = vadd.f32 %v2109, 0.5
  %v2117 = vadd.f32 %v2110, 0.5
  %v2118 = vpack.c.bf16 %v2111, %v2111
  %v2119 = vpack.c.bf16 %v2112, %v2112
  %v2120 = vpack.c.bf16 %v2113, %v2113
  %v2121 = vpack.c.bf16 %v2114, %v2114
  %v2122 = vpack.c.bf16 %v2115, %v2115
  %v2123 = vpack.c.bf16 %v2116, %v2116
  %v2124 = vpack.c.bf16 %v2117, %v2117
  %v2132 = vcombine.low %v2118, %v2119
  %v2133 = vcombine.low %v2120, %v2121
  %v2134 = vcombine.low %v2122, %v2123
  %v2136 = vunpack.c.l.s4 1966171168
  %v2137 = vunpack.c.0.s8 %v2136
  %v2138 = vlaneseq
  %v2139 = vshrl.u32 %v2138, 7
  %v2140 = vsub.s32 %v2137, %v2139
  %v2141 = vrot.slane %v2132, %v2140
  %v2143 = vunpack.c.l.s4 1966171168
  %v2144 = vunpack.c.0.s8 %v2143
  %v2145 = vlaneseq
  %v2146 = vshrl.u32 %v2145, 7
  %v2147 = vsub.s32 %v2144, %v2146
  %v2148 = vrot.slane %v2133, %v2147
  %v2150 = vunpack.c.l.s4 1966171168
  %v2151 = vunpack.c.0.s8 %v2150
  %v2152 = vlaneseq
  %v2153 = vshrl.u32 %v2152, 7
  %v2154 = vsub.s32 %v2151, %v2153
  %v2155 = vrot.slane %v2134, %v2154
  %v2157 = vunpack.c.l.s4 1966171168
  %v2158 = vunpack.c.0.s8 %v2157
  %v2159 = vlaneseq
  %v2160 = vshrl.u32 %v2159, 7
  %v2161 = vsub.s32 %v2158, %v2160
  %v2162 = vrot.slane %v2124, %v2161
  %v2163 = vcombine.low %v2141, %v2148
  %v2164 = vcombine.low %v2155, %v2162
  %v2166 = vunpack.c.l.s4 1966171168
  %v2167 = vunpack.c.0.s8 %v2166
  %v2168 = vlaneseq
  %v2169 = vshrl.u32 %v2168, 7
  %v2170 = vsub.s32 %v2167, %v2169
  %v2171 = vrot.slane %v2163, %v2170
  %v2173 = vunpack.c.l.s4 1966171168
  %v2174 = vunpack.c.0.s8 %v2173
  %v2175 = vlaneseq
  %v2176 = vshrl.u32 %v2175, 7
  %v2177 = vsub.s32 %v2174, %v2176
  %v2178 = vrot.slane %v2164, %v2177
  %v2179 = vcombine.low %v2171, %v2178
  %vm2181 = vcmask 1040384
  %vm2182 = vcmask 1041409
  %vm2183 = vmor %vm2182, %vm2181
  %vm2184 = vcmask 1042434
  %vm2185 = vmor %vm2184, %vm2183
  %vm2186 = vcmask 1043459
  %vm2187 = vmor %vm2186, %vm2185
  %vm2188 = vcmask 1044484
  %vm2189 = vmor %vm2188, %vm2187
  %vm2190 = vcmask 1045509
  %vm2191 = vmor %vm2190, %vm2189
  %vm2192 = vcmask 129030
  %vm2193 = vmor %vm2192, %vm2191
  %2194 = vst.msk [vmem:[%s9] sm:$0x7f] %vm2193, %v2179
  // Predicated region
  $region38: #{fc_autoencoder_forward.1} parent=0 // pred_check
    _
  $region39: #{fc_autoencoder_forward.1} parent=0 // pred_check_branch
    %2196 = sbr.rel (0) target = $region41
  $region40: #{fc_autoencoder_forward.1} parent=0 // pred_region
    _
  $region41: #{fc_autoencoder_forward.1} parent=0 // pred_fallthru
    _
  // Predicated region
  $region42: #{fc_autoencoder_forward.1} parent=0 // pred_check
    _
  $region43: #{fc_autoencoder_forward.1} parent=0 // pred_check_branch
    %2198 = sbr.rel (0) target = $region45
  $region44: #{fc_autoencoder_forward.1} parent=0 // pred_region
    _
  $region45: #{fc_autoencoder_forward.1} parent=0 // pred_fallthru
    _

</llo_original>
